<compile_context>
chip_gen: v7x
topology: tpu7x:2x2x1
jax: 0.10.0
libtpu: 0.0.40
codegen_flags: <defaults>
</compile_context>

<pallas_src>
import functools

import jax
import jax.numpy as jnp
from jax.experimental import pallas as pl
from jax.experimental.pallas import tpu as pltpu


def _round_up(x, m):
    return (x + m - 1) // m * m


def _cdiv(a, b):
    return (a + b - 1) // b


# ----------------------------------------------------------------------------
# Fused kernel: encoder (tiled over patches) + mean pool + both MLP heads.
# Grid = (batch_tiles [parallel], patch_tiles [arbitrary / reduction]).
# ----------------------------------------------------------------------------
def _fused_kernel(patches_ref, w_embed_ref, b_embed_ref,
                  w1_ref, b1_ref, w2_ref, b2_ref,
                  out_ref, acc_ref, *, true_p, pad_p):
    pi = pl.program_id(1)
    tb, tp, d = patches_ref.shape
    f = acc_ref.shape[1]

    @pl.when(pi == 0)
    def _init():
        acc_ref[...] = jnp.zeros_like(acc_ref)

    # ---- patch embedding: bf16 inputs on the MXU, f32 accumulation ---------
    # Large M = tb*tp amortizes the small K=48 contraction (MXU fill/drain).
    x2 = patches_ref[...].reshape(tb * tp, d)
    emb = jnp.dot(x2, w_embed_ref[...],
                  preferred_element_type=jnp.float32)          # (tb*tp, F) f32
    emb = jnp.maximum(emb + b_embed_ref[...], 0.0)             # ReLU in f32
    # no per-row validity mask: padded rows contribute ReLU(b_embed), removed
    # once at finalize.
    acc_ref[...] += jnp.sum(emb.reshape(tb, tp, f), axis=1)    # sum over P

    # ---- last patch tile: mean pool + fused coords / visibility heads ------
    @pl.when(pi == pl.num_programs(1) - 1)
    def _heads():
        enc = acc_ref[...]
        if pad_p:  # static: correct for zero-padded patch rows
            enc = enc - float(pad_p) * jnp.maximum(b_embed_ref[...], 0.0)
        enc = enc * (1.0 / true_p)                             # (tb, F) mean
        # first layers of both heads concatenated -> single MXU matmul
        h = jnp.dot(enc.astype(jnp.bfloat16), w1_ref[...],
                    preferred_element_type=jnp.float32) + b1_ref[...]
        h = jnp.where(h > 0, h, 0.01 * h)                      # LeakyReLU(0.01)
        # second layers block-diagonal in one lane-padded (2H, 128) slab;
        # eval-mode coord scale already folded into w2/b2 by the wrapper.
        out = jnp.dot(h.astype(jnp.bfloat16), w2_ref[...],
                      preferred_element_type=jnp.float32) + b2_ref[...]
        out_ref[...] = out                                     # lane-dense store


def _kaiming_normal(key, fan_in, shape):
    # nn.init.kaiming_normal_ default (fan_in, a=0) -> std = sqrt(2 / fan_in)
    return jax.random.normal(key, shape, jnp.float32) * jnp.sqrt(2.0 / fan_in)


class SwinKeypointDetectorPallas:
    """Eval-mode forward of SwinKeypointDetector with a fused Pallas kernel."""

    PATCH = 4
    FEATURE_DIM = 768  # swin_t / swin_s feature dim

    def __init__(self, num_keypoints, mlp_hidden_dim, in_channels=3, seed=0):
        self.num_keypoints = num_keypoints
        self.hidden = mlp_hidden_dim
        patch_dim = in_channels * self.PATCH * self.PATCH
        F, H, K = self.FEATURE_DIM, mlp_hidden_dim, num_keypoints
        self.out_cols = 3 * K                       # 2K coords + K visibility
        self.out_pad = _round_up(self.out_cols, 128)

        ks = jax.random.split(jax.random.PRNGKey(seed), 5)

        # encoder stand-in params (bf16 weights, f32 bias)
        self.w_embed = _kaiming_normal(ks[0], patch_dim, (patch_dim, F)).astype(jnp.bfloat16)
        self.b_embed = jnp.zeros((1, F), jnp.float32)

        # heads (weights stored [in, out]); biases init to 0 per the module.
        w1c = _kaiming_normal(ks[1], F, (F, H))
        w2c = _kaiming_normal(ks[2], H, (H, 2 * K))
        w1v = _kaiming_normal(ks[3], F, (F, H))
        w2v = _kaiming_normal(ks[4], H, (H, K))

        # first layers concatenated: (F, 2H)
        self.w1_cat = jnp.concatenate([w1c, w1v], axis=1).astype(jnp.bfloat16)
        self.b1_cat = jnp.zeros((1, 2 * H), jnp.float32)

        # second layers block-diagonal into one lane-padded slab: (2H, out_pad)
        w2_base = jnp.zeros((2 * H, self.out_pad), jnp.float32)
        w2_base = w2_base.at[:H, :2 * K].set(w2c)
        w2_base = w2_base.at[H:, 2 * K:3 * K].set(w2v)
        self.w2_base = w2_base                       # f32; scale folded per call
        self.b2_base = jnp.zeros((1, self.out_pad), jnp.float32)

    # ------------------------------------------------------------------ glue
    def _patchify(self, x_nchw):
        B, C, Hh, Ww = x_nchw.shape
        p = self.PATCH
        x = jnp.transpose(x_nchw, (0, 2, 3, 1))                  # NHWC
        x = x.reshape(B, Hh // p, p, Ww // p, p, C)
        x = jnp.transpose(x, (0, 1, 3, 2, 4, 5))
        return x.reshape(B, (Hh // p) * (Ww // p), p * p * C)    # (B, P, D)

    # ------------------------------------------------------- tile selection
    def _pick_tiles(self, B, P, D):
        # Batch tile: sublane-aligned (multiple of 8) or equal to the full
        # batch; for B > 8 split into >= 2 'parallel' grid points so v7x
        # megacore uses both TensorCores, tiles capped at 64 rows so the head
        # matmuls have a non-trivial M.
        if B <= 8:
            tb, Bp = B, B                      # block == full dim -> aligned
        else:
            Bp = _round_up(B, 8)
            n_groups = Bp // 8
            n_tiles = max(2, _cdiv(n_groups, 8))     # <=64 rows per tile
            n_groups_p = _round_up(n_groups, n_tiles)
            tb = (n_groups_p // n_tiles) * 8
            Bp = n_groups_p * 8

        # Patch tile: the whole (16-aligned) patch axis if it fits a ~12 MiB
        # single buffer (double-buffered by the pipeline -> <=24 MiB, safe on
        # v7x's 64 MiB VMEM; v5e/v6e have 128 MiB), otherwise the largest even
        # split that fits.
        tile_budget = 12 * 1024 * 1024
        max_tp = max(16, (tile_budget // (tb * D * 2)) // 16 * 16)
        Pp16 = _round_up(P, 16)
        n_pt = _cdiv(Pp16, max_tp) if Pp16 > max_tp else 1
        tp = _round_up(_cdiv(P, n_pt), 16)
        Pp = n_pt * tp
        return tb, Bp, tp, Pp

    def __call__(self, x_nchw):
        B, C, Hh, Ww = x_nchw.shape
        K = self.num_keypoints
        F = self.FEATURE_DIM
        H2 = 2 * self.hidden

        # cast BEFORE the patchify transposes: halves that HBM read+write pass
        patches = self._patchify(x_nchw.astype(jnp.bfloat16))
        P, D = patches.shape[1], patches.shape[2]

        tb, Bp, tp, Pp = self._pick_tiles(B, P, D)
        if (Bp, Pp) != (B, P):
            patches = jnp.pad(patches, ((0, Bp - B), (0, Pp - P), (0, 0)))

        # fold eval-mode coordinate scaling (x*W, y*H interleaved) into layer 2
        scale = jnp.ones((self.out_pad,), jnp.float32)
        scale = scale.at[:2 * K].set(
            jnp.tile(jnp.array([float(Ww), float(Hh)], jnp.float32), K))
        w2 = (self.w2_base * scale[None, :]).astype(jnp.bfloat16)
        b2 = self.b2_base * scale[None, :]

        const = lambda bi, pi: (0, 0)
        grid = (Bp // tb, Pp // tp)

        # explicit VMEM budget: tiles are sized for v7x's 64 MiB part; the
        # default scoped limit (16/32 MiB) would otherwise cap the pipeline.
        weight_bytes = ((D * F + F * H2 + H2 * self.out_pad) * 2
                        + (F + H2 + self.out_pad) * 4)
        vmem_need = (2 * tb * tp * D * 2            # double-buffered patches
                     + 2 * weight_bytes             # double-buffered weights
                     + tb * F * 4                   # accumulator scratch
                     + 2 * tb * self.out_pad * 4)   # output buffers
        vmem_limit = min(max(int(vmem_need * 1.5) + (2 << 20), 32 << 20), 48 << 20)

        out = pl.pallas_call(
            functools.partial(_fused_kernel, true_p=P, pad_p=Pp - P),
            out_shape=jax.ShapeDtypeStruct((Bp, self.out_pad), jnp.float32),
            grid_spec=pltpu.PrefetchScalarGridSpec(
                num_scalar_prefetch=0,
                grid=grid,
                in_specs=[
                    pl.BlockSpec((tb, tp, D), lambda bi, pi: (bi, pi, 0)),
                    pl.BlockSpec((D, F), const),
                    pl.BlockSpec((1, F), const),
                    pl.BlockSpec((F, H2), const),
                    pl.BlockSpec((1, H2), const),
                    pl.BlockSpec((H2, self.out_pad), const),
                    pl.BlockSpec((1, self.out_pad), const),
                ],
                out_specs=pl.BlockSpec((tb, self.out_pad), lambda bi, pi: (bi, 0)),
                scratch_shapes=[pltpu.VMEM((tb, F), jnp.float32)],
            ),
            compiler_params=pltpu.CompilerParams(
                dimension_semantics=("parallel", "arbitrary"),
                vmem_limit_bytes=vmem_limit),
        )(patches, self.w_embed, self.b_embed,
          self.w1_cat, self.b1_cat, w2, b2)

        scaled_coords = out[:B, :2 * K].reshape(B, K, 2)
        visibility = out[:B, 2 * K:3 * K].reshape(B, K, 1)   # raw logits, as in the module
        return scaled_coords, visibility


if __name__ == "__main__":
    # small deterministic input matching the module's NCHW image interface
    key = jax.random.PRNGKey(0)
    x = jax.random.normal(key, (2, 3, 16, 16), jnp.float32)   # B=2, C=3, 16x16

    model = SwinKeypointDetectorPallas(num_keypoints=8, mlp_hidden_dim=128)
    coords, vis = model(x)
    jax.block_until_ready((coords, vis))

    assert coords.shape == (2, 8, 2)
    assert vis.shape == (2, 8, 1)
    assert bool(jnp.all(jnp.isfinite(coords))) and bool(jnp.all(jnp.isfinite(vis)))
    print("KERNEL_OK")
</pallas_src>

<mosaic_0001>
module attributes {stable_mosaic.version = 11 : i64} {
  func.func @_fused_kernel(%arg0: i32, %arg1: i32, %arg2: memref<2x16x48xbf16, #tpu.memory_space<vmem>>, %arg3: memref<48x768xbf16, #tpu.memory_space<vmem>>, %arg4: memref<1x768xf32, #tpu.memory_space<vmem>>, %arg5: memref<768x256xbf16, #tpu.memory_space<vmem>>, %arg6: memref<1x256xf32, #tpu.memory_space<vmem>>, %arg7: memref<256x128xbf16, #tpu.memory_space<vmem>>, %arg8: memref<1x128xf32, #tpu.memory_space<vmem>>, %arg9: memref<2x128xf32, #tpu.memory_space<vmem>>, %arg10: memref<2x768xf32, #tpu.memory_space<vmem>>) attributes {dimension_semantics = [#tpu.dimension_semantics<parallel>, #tpu.dimension_semantics<arbitrary>], iteration_bounds = array<i64: 1, 1>, scalar_prefetch = 0 : i64, scratch_operands = 1 : i64, tpu.core_type = #tpu.core_type<tc>, window_params = [{transform_indices = @transform_0, window_bounds = array<i64: 2, 16, 48>}, {pipeline_mode = #tpu.pipeline_mode<synchronous>, transform_indices = @transform_1, window_bounds = array<i64: 48, 768>}, {pipeline_mode = #tpu.pipeline_mode<synchronous>, transform_indices = @transform_2, window_bounds = array<i64: 1, 768>}, {pipeline_mode = #tpu.pipeline_mode<synchronous>, transform_indices = @transform_3, window_bounds = array<i64: 768, 256>}, {pipeline_mode = #tpu.pipeline_mode<synchronous>, transform_indices = @transform_4, window_bounds = array<i64: 1, 256>}, {pipeline_mode = #tpu.pipeline_mode<synchronous>, transform_indices = @transform_5, window_bounds = array<i64: 256, 128>}, {pipeline_mode = #tpu.pipeline_mode<synchronous>, transform_indices = @transform_6, window_bounds = array<i64: 1, 128>}, {transform_indices = @transform_7, window_bounds = array<i64: 2, 128>}]} {
    %c0_i32 = arith.constant 0 : i32
    %0 = arith.cmpi eq, %arg1, %c0_i32 : i32
    %1 = arith.extui %0 : i1 to i32
    %c0_i32_0 = arith.constant 0 : i32
    %2 = arith.cmpi ne, %1, %c0_i32_0 : i32
    scf.if %2 {
      %cst_15 = arith.constant 0.000000e+00 : f32
      %20 = vector.broadcast %cst_15 : f32 to vector<2x768xf32>
      %c0_16 = arith.constant 0 : index
      %c0_17 = arith.constant 0 : index
      %21 = vector.load %arg10[%c0_16, %c0_17] : memref<2x768xf32, #tpu.memory_space<vmem>>, vector<2x768xf32>
      tpu.vector_store %arg10[%c0_16, %c0_17], %20 {strides = array<i32>} : memref<2x768xf32, #tpu.memory_space<vmem>>, vector<2x768xf32>,
    } else {
    }
    %c0 = arith.constant 0 : index
    %c0_1 = arith.constant 0 : index
    %c0_2 = arith.constant 0 : index
    %3 = vector.load %arg2[%c0, %c0_1, %c0_2] : memref<2x16x48xbf16, #tpu.memory_space<vmem>>, vector<2x16x48xbf16>
    %4 = vector.shape_cast %3 : vector<2x16x48xbf16> to vector<32x48xbf16>
    %c0_3 = arith.constant 0 : index
    %c0_4 = arith.constant 0 : index
    %5 = vector.load %arg3[%c0_3, %c0_4] : memref<48x768xbf16, #tpu.memory_space<vmem>>, vector<48x768xbf16>
    %cst = arith.constant dense<0.000000e+00> : vector<32x768xf32>
    %6 = tpu.matmul %4, %5, %cst {dimension_numbers = #tpu.dot_dimension_numbers<[1], [0], [0], [1], [0, 0, 1, 1], [], []>} : vector<32x48xbf16>, vector<48x768xbf16>, vector<32x768xf32> -> vector<32x768xf32>
    %c0_5 = arith.constant 0 : index
    %c0_6 = arith.constant 0 : index
    %7 = vector.load %arg4[%c0_5, %c0_6] : memref<1x768xf32, #tpu.memory_space<vmem>>, vector<1x768xf32>
    %8 = vector.broadcast %7 : vector<1x768xf32> to vector<32x768xf32>
    %9 = arith.addf %6, %8 : vector<32x768xf32>
    %cst_7 = arith.constant 0.000000e+00 : f32
    %10 = vector.broadcast %cst_7 : f32 to vector<32x768xf32>
    %11 = arith.maximumf %9, %10 : vector<32x768xf32>
    %c0_8 = arith.constant 0 : index
    %c0_9 = arith.constant 0 : index
    %12 = vector.load %arg10[%c0_8, %c0_9] : memref<2x768xf32, #tpu.memory_space<vmem>>, vector<2x768xf32>
    %13 = vector.shape_cast %11 : vector<32x768xf32> to vector<2x16x768xf32>
    %cst_10 = arith.constant dense<0.000000e+00> : vector<2x768xf32>
    %14 = vector.multi_reduction <add>, %13, %cst_10 [1] : vector<2x16x768xf32> to vector<2x768xf32>
    %15 = arith.addf %12, %14 : vector<2x768xf32>
    %c0_11 = arith.constant 0 : index
    %c0_12 = arith.constant 0 : index
    %16 = vector.load %arg10[%c0_11, %c0_12] : memref<2x768xf32, #tpu.memory_space<vmem>>, vector<2x768xf32>
    tpu.vector_store %arg10[%c0_11, %c0_12], %15 {strides = array<i32>} : memref<2x768xf32, #tpu.memory_space<vmem>>, vector<2x768xf32>,
    %c0_i32_13 = arith.constant 0 : i32
    %17 = arith.cmpi eq, %arg1, %c0_i32_13 : i32
    %18 = arith.extui %17 : i1 to i32
    %c0_i32_14 = arith.constant 0 : i32
    %19 = arith.cmpi ne, %18, %c0_i32_14 : i32
    scf.if %19 {
      %c0_15 = arith.constant 0 : index
      %c0_16 = arith.constant 0 : index
      %20 = vector.load %arg10[%c0_15, %c0_16] : memref<2x768xf32, #tpu.memory_space<vmem>>, vector<2x768xf32>
      %cst_17 = arith.constant 6.250000e-02 : f32
      %21 = vector.broadcast %cst_17 : f32 to vector<2x768xf32>
      %22 = arith.mulf %20, %21 : vector<2x768xf32>
      %23 = arith.truncf %22 : vector<2x768xf32> to vector<2x768xbf16>
      %c0_18 = arith.constant 0 : index
      %c0_19 = arith.constant 0 : index
      %24 = vector.load %arg5[%c0_18, %c0_19] : memref<768x256xbf16, #tpu.memory_space<vmem>>, vector<768x256xbf16>
      %cst_20 = arith.constant dense<0.000000e+00> : vector<2x256xf32>
      %25 = tpu.matmul %23, %24, %cst_20 {dimension_numbers = #tpu.dot_dimension_numbers<[1], [0], [0], [1], [0, 0, 1, 1], [], []>} : vector<2x768xbf16>, vector<768x256xbf16>, vector<2x256xf32> -> vector<2x256xf32>
      %c0_21 = arith.constant 0 : index
      %c0_22 = arith.constant 0 : index
      %26 = vector.load %arg6[%c0_21, %c0_22] : memref<1x256xf32, #tpu.memory_space<vmem>>, vector<1x256xf32>
      %27 = vector.broadcast %26 : vector<1x256xf32> to vector<2x256xf32>
      %28 = arith.addf %25, %27 : vector<2x256xf32>
      %cst_23 = arith.constant 0.000000e+00 : f32
      %29 = vector.broadcast %cst_23 : f32 to vector<2x256xf32>
      %30 = arith.cmpf ogt, %28, %29 : vector<2x256xf32>
      %cst_24 = arith.constant 0.00999999977 : f32
      %31 = vector.broadcast %cst_24 : f32 to vector<2x256xf32>
      %32 = arith.mulf %31, %28 : vector<2x256xf32>
      %33 = arith.select %30, %28, %32 : vector<2x256xi1>, vector<2x256xf32>
      %34 = arith.truncf %33 : vector<2x256xf32> to vector<2x256xbf16>
      %c0_25 = arith.constant 0 : index
      %c0_26 = arith.constant 0 : index
      %35 = vector.load %arg7[%c0_25, %c0_26] : memref<256x128xbf16, #tpu.memory_space<vmem>>, vector<256x128xbf16>
      %cst_27 = arith.constant dense<0.000000e+00> : vector<2x128xf32>
      %36 = tpu.matmul %34, %35, %cst_27 {dimension_numbers = #tpu.dot_dimension_numbers<[1], [0], [0], [1], [0, 0, 1, 1], [], []>} : vector<2x256xbf16>, vector<256x128xbf16>, vector<2x128xf32> -> vector<2x128xf32>
      %c0_28 = arith.constant 0 : index
      %c0_29 = arith.constant 0 : index
      %37 = vector.load %arg8[%c0_28, %c0_29] : memref<1x128xf32, #tpu.memory_space<vmem>>, vector<1x128xf32>
      %38 = vector.broadcast %37 : vector<1x128xf32> to vector<2x128xf32>
      %39 = arith.addf %36, %38 : vector<2x128xf32>
      %c0_30 = arith.constant 0 : index
      %c0_31 = arith.constant 0 : index
      %40 = vector.load %arg9[%c0_30, %c0_31] : memref<2x128xf32, #tpu.memory_space<vmem>>, vector<2x128xf32>
      tpu.vector_store %arg9[%c0_30, %c0_31], %39 {strides = array<i32>} : memref<2x128xf32, #tpu.memory_space<vmem>>, vector<2x128xf32>,
    } else {
    }
    return
  }
  func.func @transform_0(%arg0: i32, %arg1: i32) -> (i32, i32, i32) {
    %c0_i32 = arith.constant 0 : i32
    %c0_i32_0 = arith.constant 0 : i32
    return %arg0, %arg1, %c0_i32 : i32, i32, i32
  }
  func.func @transform_1(%arg0: i32, %arg1: i32) -> (i32, i32) {
    %c0_i32 = arith.constant 0 : i32
    %c0_i32_0 = arith.constant 0 : i32
    %c0_i32_1 = arith.constant 0 : i32
    return %c0_i32, %c0_i32_0 : i32, i32
  }
  func.func @transform_2(%arg0: i32, %arg1: i32) -> (i32, i32) {
    %c0_i32 = arith.constant 0 : i32
    %c0_i32_0 = arith.constant 0 : i32
    %c0_i32_1 = arith.constant 0 : i32
    return %c0_i32, %c0_i32_0 : i32, i32
  }
  func.func @transform_3(%arg0: i32, %arg1: i32) -> (i32, i32) {
    %c0_i32 = arith.constant 0 : i32
    %c0_i32_0 = arith.constant 0 : i32
    %c0_i32_1 = arith.constant 0 : i32
    return %c0_i32, %c0_i32_0 : i32, i32
  }
  func.func @transform_4(%arg0: i32, %arg1: i32) -> (i32, i32) {
    %c0_i32 = arith.constant 0 : i32
    %c0_i32_0 = arith.constant 0 : i32
    %c0_i32_1 = arith.constant 0 : i32
    return %c0_i32, %c0_i32_0 : i32, i32
  }
  func.func @transform_5(%arg0: i32, %arg1: i32) -> (i32, i32) {
    %c0_i32 = arith.constant 0 : i32
    %c0_i32_0 = arith.constant 0 : i32
    %c0_i32_1 = arith.constant 0 : i32
    return %c0_i32, %c0_i32_0 : i32, i32
  }
  func.func @transform_6(%arg0: i32, %arg1: i32) -> (i32, i32) {
    %c0_i32 = arith.constant 0 : i32
    %c0_i32_0 = arith.constant 0 : i32
    %c0_i32_1 = arith.constant 0 : i32
    return %c0_i32, %c0_i32_0 : i32, i32
  }
  func.func @transform_7(%arg0: i32, %arg1: i32) -> (i32, i32) {
    %c0_i32 = arith.constant 0 : i32
    %c0_i32_0 = arith.constant 0 : i32
    return %arg0, %c0_i32 : i32, i32
  }
}

</mosaic_0001>

<llo_original>
// kernel: tpu_custom_call.1
$region0: #{tpu_custom_call.1}
  #allocation0 [shape = 'u32[]', space=smem, size = 0x4, offset = 0x4, fixed_abs, tag = 'smem constant byte address 0x4 - core index']
  #allocation1 [shape = 'u32[144,128]{1,0:T(1,128)}', space=vmem, size = 0x12000, scoped, tag = 'internal scratch']
  #allocation2 [shape = 'f32[2,768]{1,0:T(2,128)}', space=vmem, size = 0x1800, scoped, tag = 'scratch operand']
  %s0 = inlined_call_operand.hbm [shape: bf16[2,16,48], index: 0, kind: input, shape index: {}]
  %s1 = inlined_call_operand.hbm [shape: bf16[48,768], index: 1, kind: input, shape index: {}]
  %s2 = inlined_call_operand.vmem [shape: f32[1,768], index: 2, kind: input, shape index: {}]
  %s3 = inlined_call_operand.hbm [shape: bf16[768,256], index: 3, kind: input, shape index: {}]
  %s4 = inlined_call_operand.vmem [shape: f32[1,256], index: 4, kind: input, shape index: {}]
  %s5 = inlined_call_operand.hbm [shape: bf16[256,128], index: 5, kind: input, shape index: {}]
  %s6 = inlined_call_operand.vmem [shape: f32[1,128], index: 6, kind: input, shape index: {}]
  %s7 = inlined_call_operand.hbm [shape: f32[2,128], index: 7, kind: output, shape index: {}]
  %s8 = sld [smem:[#allocation0]]
  $region62: #{tpu_custom_call.1} parent=0
    _
  %s10 = ssub.s32 1, %s8
  %s11 = scalar_select 0, %s10, %s8
  $region1: #{tpu_custom_call.1} parent=0
    #allocation3 [shape = 'u8[8192]{0}', space=vmem, size = 0x2000, scoped, tag = 'input window, operand 0, single buffered']
    #allocation4 [shape = 's32[1]{0}', space=sflag, size = 0x4, scoped, tag = 'scoped memory for tpu_custom_call.1']
    #allocation5 [shape = 's32[1]{0}', space=sflag, size = 0x4, scoped, tag = 'scoped memory for tpu_custom_call.1']
    #allocation6 [shape = 'u8[73728]{0}', space=vmem, size = 0x12000, scoped, tag = 'input window, operand 1, single buffered']
    #allocation7 [shape = 's32[1]{0}', space=sflag, size = 0x4, scoped, tag = 'scoped memory for tpu_custom_call.1']
    #allocation8 [shape = 'u8[393216]{0}', space=vmem, size = 0x60000, scoped, tag = 'input window, operand 3, single buffered']
    #allocation9 [shape = 'u8[65536]{0}', space=vmem, size = 0x10000, scoped, tag = 'input window, operand 5, single buffered']
    #allocation10 [shape = 's32[1]{0}', space=sflag, size = 0x4, scoped, tag = 'scoped memory for tpu_custom_call.1']
    #allocation11 [shape = 'u8[1024]{0}', space=vmem, size = 0x400, scoped, tag = 'output window, operand 0, single buffered']
    %12 = vsyncpa [#allocation4], 0
    %13 = vsyncpa [#allocation7], 0
    %14 = vsyncpa [#allocation10], 0
    %15 = vsyncpa [#allocation5], 0
    // Predicated region
    $region2: #{tpu_custom_call.1} parent=1 // pred_check
      _
    $region3: #{tpu_custom_call.1} parent=1 // pred_check_branch
      %17 = sbr.rel (0) target = $region5
    $region4: #{tpu_custom_call.1} parent=1 // pred_region
      %s19 = ssub.s32 256, 256
      %20 = vsyncadd [#allocation4], %s19
      %s21 = sshll.u32 [#allocation3], 4
      %s22 = int_to_ptr.vmem [resolvable:$true] %s21
      %27 = dma.hbm_to_vmem [thread:$0]  %s0, 256, %s22, [#allocation4], 64, 64, 4
    $region5: #{tpu_custom_call.1} parent=1 // pred_fallthru
      _
    // Predicated region
    $region6: #{tpu_custom_call.1} parent=1 // pred_check
      _
    $region7: #{tpu_custom_call.1} parent=1 // pred_check_branch
      %29 = sbr.rel (0) target = $region9
    $region8: #{tpu_custom_call.1} parent=1 // pred_region
      %s31 = ssub.s32 2304, 2304
      %32 = vsyncadd [#allocation7], %s31
      %s33 = sshll.u32 [#allocation6], 4
      %s34 = int_to_ptr.vmem [resolvable:$true] %s33
      %39 = dma.hbm_to_vmem [thread:$0]  %s1, 2304, %s34, [#allocation7], 384, 384, 24
    $region9: #{tpu_custom_call.1} parent=1 // pred_fallthru
      _
    // Predicated region
    $region10: #{tpu_custom_call.1} parent=1 // pred_check
      _
    $region11: #{tpu_custom_call.1} parent=1 // pred_check_branch
      %41 = sbr.rel (0) target = $region13
    $region12: #{tpu_custom_call.1} parent=1 // pred_region
      _
    $region13: #{tpu_custom_call.1} parent=1 // pred_fallthru
      _
    // Predicated region
    $region14: #{tpu_custom_call.1} parent=1 // pred_check
      _
    $region15: #{tpu_custom_call.1} parent=1 // pred_check_branch
      %43 = sbr.rel (0) target = $region17
    $region16: #{tpu_custom_call.1} parent=1 // pred_region
      %s45 = ssub.s32 12288, 12288
      %46 = vsyncadd [#allocation7], %s45
      %s47 = sshll.u32 [#allocation8], 4
      %s48 = int_to_ptr.vmem [resolvable:$true] %s47
      %53 = dma.hbm_to_vmem [thread:$0]  %s3, 12288, %s48, [#allocation7], 128, 128, 8
    $region17: #{tpu_custom_call.1} parent=1 // pred_fallthru
      _
    // Predicated region
    $region18: #{tpu_custom_call.1} parent=1 // pred_check
      _
    $region19: #{tpu_custom_call.1} parent=1 // pred_check_branch
      %55 = sbr.rel (0) target = $region21
    $region20: #{tpu_custom_call.1} parent=1 // pred_region
      _
    $region21: #{tpu_custom_call.1} parent=1 // pred_fallthru
      _
    // Predicated region
    $region22: #{tpu_custom_call.1} parent=1 // pred_check
      _
    $region23: #{tpu_custom_call.1} parent=1 // pred_check_branch
      %57 = sbr.rel (0) target = $region25
    $region24: #{tpu_custom_call.1} parent=1 // pred_region
      %s59 = ssub.s32 2048, 2048
      %60 = vsyncadd [#allocation10], %s59
      %s61 = sshll.u32 [#allocation9], 4
      %s62 = int_to_ptr.vmem [resolvable:$true] %s61
      %67 = dma.hbm_to_vmem [thread:$0]  %s5, 2048, %s62, [#allocation10], 64, 64, 4
    $region25: #{tpu_custom_call.1} parent=1 // pred_fallthru
      _
    // Predicated region
    $region26: #{tpu_custom_call.1} parent=1 // pred_check
      _
    $region27: #{tpu_custom_call.1} parent=1 // pred_check_branch
      %69 = sbr.rel (0) target = $region29
    $region28: #{tpu_custom_call.1} parent=1 // pred_region
      _
    $region29: #{tpu_custom_call.1} parent=1 // pred_fallthru
      _
    // Predicated region
    $region30: #{tpu_custom_call.1} parent=1 // pred_check
      _
    $region31: #{tpu_custom_call.1} parent=1 // pred_check_branch
      %71 = sbr.rel (0) target = $region33
    $region32: #{tpu_custom_call.1} parent=1 // pred_region
      %72 = dma.done [#allocation4], 256
    $region33: #{tpu_custom_call.1} parent=1 // pred_fallthru
      _
    // Predicated region
    $region34: #{tpu_custom_call.1} parent=1 // pred_check
      _
    $region35: #{tpu_custom_call.1} parent=1 // pred_check_branch
      %74 = sbr.rel (0) target = $region37
    $region36: #{tpu_custom_call.1} parent=1 // pred_region
      %75 = dma.done [#allocation7], 2304
    $region37: #{tpu_custom_call.1} parent=1 // pred_fallthru
      _
    // Predicated region
    $region38: #{tpu_custom_call.1} parent=1 // pred_check
      _
    $region39: #{tpu_custom_call.1} parent=1 // pred_check_branch
      %77 = sbr.rel (0) target = $region41
    $region40: #{tpu_custom_call.1} parent=1 // pred_region
      %78 = dma.done [#allocation7], 12288
    $region41: #{tpu_custom_call.1} parent=1 // pred_fallthru
      _
    // Predicated region
    $region42: #{tpu_custom_call.1} parent=1 // pred_check
      _
    $region43: #{tpu_custom_call.1} parent=1 // pred_check_branch
      %80 = sbr.rel (0) target = $region45
    $region44: #{tpu_custom_call.1} parent=1 // pred_region
      %81 = dma.done [#allocation10], 2048
    $region45: #{tpu_custom_call.1} parent=1 // pred_fallthru
      _
    %p83 = scmp.eq.s32.totalorder 0, 0
    // Predicated region
    $region46: #{tpu_custom_call.1} parent=1 // pred_check
      %p84 = pneg %p83
    $region47: #{tpu_custom_call.1} parent=1 // pred_check_branch
      %86 = sbr.rel (%p84) target = $region49
    $region48: #{tpu_custom_call.1} parent=1 // pred_region
      %87 = vst [vmem:[#allocation2] sm:$0xff] 0.0
      %88 = vst [vmem:[#allocation2 + $0x8] sm:$0xf] 0.0
    $region49: #{tpu_custom_call.1} parent=1 // pred_fallthru
      _
    %v89 = vld [vmem:[#allocation3] sm:$0xf]
    %v90 = vld [vmem:[#allocation3 + $0x4] sm:$0xf]
    %v91 = vld [vmem:[#allocation3 + $0x8] sm:$0xf]
    %v92 = vld [vmem:[#allocation3 + $0xc] sm:$0xf]
    %v93 = vld [vmem:[#allocation6] sm:$0xff]
    %v94 = vld [vmem:[#allocation6 + $0x8] sm:$0xff]
    %v95 = vld [vmem:[#allocation6 + $0x10] sm:$0xff]
    %v96 = vld [vmem:[#allocation6 + $0x18] sm:$0xff]
    %v97 = vld [vmem:[#allocation6 + $0x20] sm:$0xff]
    %v98 = vld [vmem:[#allocation6 + $0x28] sm:$0xff]
    %v99 = vld [vmem:[#allocation6 + $0x30] sm:$0xff]
    %v100 = vld [vmem:[#allocation6 + $0x38] sm:$0xff]
    %v101 = vld [vmem:[#allocation6 + $0x40] sm:$0xff]
    %v102 = vld [vmem:[#allocation6 + $0x48] sm:$0xff]
    %v103 = vld [vmem:[#allocation6 + $0x50] sm:$0xff]
    %v104 = vld [vmem:[#allocation6 + $0x58] sm:$0xff]
    %v105 = vld [vmem:[#allocation6 + $0x60] sm:$0xff]
    %v106 = vld [vmem:[#allocation6 + $0x68] sm:$0xff]
    %v107 = vld [vmem:[#allocation6 + $0x70] sm:$0xff]
    %v108 = vld [vmem:[#allocation6 + $0x78] sm:$0xff]
    %v109 = vld [vmem:[#allocation6 + $0x80] sm:$0xff]
    %v110 = vld [vmem:[#allocation6 + $0x88] sm:$0xff]
    %v111 = vld [vmem:[%s2] sm:$0x3f]
    %v113 = vlaneseq
    %v114 = vshrl.u32 %v113, 7
    %v115 = vsub.s32 0, %v114
    %v116 = vrot.slane %v111, %v115
    %v117 = vlaneseq
    %v118 = vshrl.u32 %v117, 7
    %v119 = vsub.s32 1, %v118
    %v120 = vrot.slane %v111, %v119
    %v121 = vlaneseq
    %v122 = vshrl.u32 %v121, 7
    %v123 = vsub.s32 2, %v122
    %v124 = vrot.slane %v111, %v123
    %v125 = vlaneseq
    %v126 = vshrl.u32 %v125, 7
    %v127 = vsub.s32 3, %v126
    %v128 = vrot.slane %v111, %v127
    %v129 = vlaneseq
    %v130 = vshrl.u32 %v129, 7
    %v131 = vsub.s32 4, %v130
    %v132 = vrot.slane %v111, %v131
    %v133 = vlaneseq
    %v134 = vshrl.u32 %v133, 7
    %v135 = vsub.s32 5, %v134
    %v136 = vrot.slane %v111, %v135
    %v147 = vunpack.c.l.b16 %v89
    %v148 = vunpack.c.l.b16 %v90
    %v149 = vunpack.c.l.b16 %v91
    %v150 = vunpack.c.l.b16 %v92
    %v151 = vpack.c.b16 %v148, %v147
    %v152 = vpack.c.b16 %v150, %v149
    %v171 = vunpack.c.l.b16 %v93
    %v172 = vunpack.c.h.b16 %v93
    %v173 = vunpack.c.l.b16 %v94
    %v174 = vunpack.c.h.b16 %v94
    %v175 = vunpack.c.l.b16 %v95
    %v176 = vunpack.c.h.b16 %v95
    %v177 = vunpack.c.l.b16 %v96
    %v178 = vunpack.c.h.b16 %v96
    %v179 = vunpack.c.l.b16 %v97
    %v180 = vunpack.c.h.b16 %v97
    %v181 = vunpack.c.l.b16 %v98
    %v182 = vunpack.c.h.b16 %v98
    %v183 = vunpack.c.l.b16 %v99
    %v184 = vunpack.c.h.b16 %v99
    %v185 = vunpack.c.l.b16 %v100
    %v186 = vunpack.c.h.b16 %v100
    %v187 = vunpack.c.l.b16 %v101
    %v188 = vunpack.c.h.b16 %v101
    %v189 = vunpack.c.l.b16 %v102
    %v190 = vunpack.c.h.b16 %v102
    %v191 = vunpack.c.l.b16 %v103
    %v192 = vunpack.c.h.b16 %v103
    %v193 = vunpack.c.l.b16 %v104
    %v194 = vunpack.c.h.b16 %v104
    %v195 = vunpack.c.l.b16 %v105
    %v196 = vunpack.c.h.b16 %v105
    %v197 = vunpack.c.l.b16 %v106
    %v198 = vunpack.c.h.b16 %v106
    %v199 = vunpack.c.l.b16 %v107
    %v200 = vunpack.c.h.b16 %v107
    %v201 = vunpack.c.l.b16 %v108
    %v202 = vunpack.c.h.b16 %v108
    %v203 = vunpack.c.l.b16 %v109
    %v204 = vunpack.c.h.b16 %v109
    %v205 = vunpack.c.l.b16 %v110
    %v206 = vunpack.c.h.b16 %v110
    %v207 = vpack.c.b16 %v177, %v171
    %v208 = vpack.c.b16 %v178, %v172
    %v209 = vpack.c.b16 %v179, %v173
    %v210 = vpack.c.b16 %v180, %v174
    %v211 = vpack.c.b16 %v181, %v175
    %v212 = vpack.c.b16 %v182, %v176
    %v213 = vpack.c.b16 %v189, %v183
    %v214 = vpack.c.b16 %v190, %v184
    %v215 = vpack.c.b16 %v191, %v185
    %v216 = vpack.c.b16 %v192, %v186
    %v217 = vpack.c.b16 %v193, %v187
    %v218 = vpack.c.b16 %v194, %v188
    %v219 = vpack.c.b16 %v201, %v195
    %v220 = vpack.c.b16 %v202, %v196
    %v221 = vpack.c.b16 %v203, %v197
    %v222 = vpack.c.b16 %v204, %v198
    %v223 = vpack.c.b16 %v205, %v199
    %v224 = vpack.c.b16 %v206, %v200
    %vm243 = vcmask 392192
    %v245 = vsel %vm243, %v151, 0
    %v248 = vsel %vm243, %v152, 0
    %250 = vmatprep.subr.bf16.mxu0 %v208
    %251 = vmatpush1.bf16.msra.mxu0 %v207
    %252 = vmatprep.subr.bf16.mxu0 %v214
    %253 = vmatpush1.bf16.msra.mxu0 %v213
    %254 = vmatprep.subr.bf16.mxu0 %v220
    %255 = vmatpush1.bf16.msra.mxu0 %v219
    %256 = vmatprep.subr.bf16.mxu0 0
    %257 = vmatpush1.bf16.msra.mxu0 0
    %258 = vmatprep.subr.bf16.mxu0 0
    %259 = vmatpush1.bf16.msra.mxu0 0
    %260 = vmatprep.subr.bf16.mxu0 0
    %261 = vmatpush1.bf16.msra.mxu0 0
    %262 = vmatprep.subr.bf16.mxu0 0
    %263 = vmatpush1.bf16.msra.mxu0 0
    %264 = vmatprep.subr.bf16.mxu0 0
    %265 = vmatpush1.bf16.msra.mxu0 0
    %266 = vmatprep.subr.bf16.mxu0 0
    %267 = vmatpush1.bf16.msra.mxu0 0
    %268 = vmatprep.subr.bf16.mxu0 0
    %269 = vmatpush1.bf16.msra.mxu0 0
    %270 = vmatprep.subr.bf16.mxu0 0
    %271 = vmatpush1.bf16.msra.mxu0 0
    %272 = vmatprep.subr.bf16.mxu0 0
    %273 = vmatpush1.bf16.msra.mxu0 0
    %274 = vmatprep.subr.bf16.mxu0 0
    %275 = vmatpush1.bf16.msra.mxu0 0
    %276 = vmatprep.subr.bf16.mxu0 0
    %277 = vmatpush1.bf16.msra.mxu0 0
    %278 = vmatprep.subr.bf16.mxu0 0
    %279 = vmatpush1.bf16.msra.mxu0 0
    %280 = vmatprep.subr.bf16.mxu0 0
    %281 = vmatpush1.bf16.msra.mxu0 0
    %282 = vmatprep.mubr.bf16.mxu0 0
    %283 = vmatmul.mubr.bf16.gmra.mrb[0].mxu0 %v245
    %v284 = vpop.f32.mrb[0].mxu0
    %v285 = vadd.f32 %v116, %v284
    %v286 = vpop.f32.mrb[0].mxu0
    %v287 = vadd.f32 %v120, %v286
    %v288 = vpop.f32.mrb[0].mxu0
    %v289 = vadd.f32 %v116, %v288
    %v290 = vpop.f32.mrb[0].mxu0
    %v291 = vadd.f32 %v120, %v290
    %292 = vmatprep.mubr.bf16.mxu0 0
    %293 = vmatmul.mubr.bf16.gmra.mrb[0].mxu0 %v248
    %v294 = vpop.f32.mrb[0].mxu0
    %v295 = vadd.f32 %v116, %v294
    %v296 = vpop.f32.mrb[0].mxu0
    %v297 = vadd.f32 %v120, %v296
    %v298 = vpop.f32.mrb[0].mxu0
    %v299 = vadd.f32 %v116, %v298
    %v300 = vpop.f32.mrb[0].mxu0
    %v301 = vadd.f32 %v120, %v300
    %302 = vdwg.mxu0
    %303 = vmatprep.subr.bf16.mxu0 %v210
    %304 = vmatpush1.bf16.msra.mxu0 %v209
    %305 = vmatprep.subr.bf16.mxu0 %v216
    %306 = vmatpush1.bf16.msra.mxu0 %v215
    %307 = vmatprep.subr.bf16.mxu0 %v222
    %308 = vmatpush1.bf16.msra.mxu0 %v221
    %309 = vmatprep.subr.bf16.mxu0 0
    %310 = vmatpush1.bf16.msra.mxu0 0
    %311 = vmatprep.subr.bf16.mxu0 0
    %312 = vmatpush1.bf16.msra.mxu0 0
    %313 = vmatprep.subr.bf16.mxu0 0
    %314 = vmatpush1.bf16.msra.mxu0 0
    %315 = vmatprep.subr.bf16.mxu0 0
    %316 = vmatpush1.bf16.msra.mxu0 0
    %317 = vmatprep.subr.bf16.mxu0 0
    %318 = vmatpush1.bf16.msra.mxu0 0
    %319 = vmatprep.subr.bf16.mxu0 0
    %320 = vmatpush1.bf16.msra.mxu0 0
    %321 = vmatprep.subr.bf16.mxu0 0
    %322 = vmatpush1.bf16.msra.mxu0 0
    %323 = vmatprep.subr.bf16.mxu0 0
    %324 = vmatpush1.bf16.msra.mxu0 0
    %325 = vmatprep.subr.bf16.mxu0 0
    %326 = vmatpush1.bf16.msra.mxu0 0
    %327 = vmatprep.subr.bf16.mxu0 0
    %328 = vmatpush1.bf16.msra.mxu0 0
    %329 = vmatprep.subr.bf16.mxu0 0
    %330 = vmatpush1.bf16.msra.mxu0 0
    %331 = vmatprep.subr.bf16.mxu0 0
    %332 = vmatpush1.bf16.msra.mxu0 0
    %333 = vmatprep.subr.bf16.mxu0 0
    %334 = vmatpush1.bf16.msra.mxu0 0
    %335 = vmatprep.mubr.bf16.mxu0 0
    %336 = vmatmul.mubr.bf16.gmra.mrb[0].mxu0 %v245
    %v337 = vpop.f32.mrb[0].mxu0
    %v338 = vadd.f32 %v124, %v337
    %v339 = vpop.f32.mrb[0].mxu0
    %v340 = vadd.f32 %v128, %v339
    %v341 = vpop.f32.mrb[0].mxu0
    %v342 = vadd.f32 %v124, %v341
    %v343 = vpop.f32.mrb[0].mxu0
    %v344 = vadd.f32 %v128, %v343
    %345 = vmatprep.mubr.bf16.mxu0 0
    %346 = vmatmul.mubr.bf16.gmra.mrb[0].mxu0 %v248
    %v347 = vpop.f32.mrb[0].mxu0
    %v348 = vadd.f32 %v124, %v347
    %v349 = vpop.f32.mrb[0].mxu0
    %v350 = vadd.f32 %v128, %v349
    %v351 = vpop.f32.mrb[0].mxu0
    %v352 = vadd.f32 %v124, %v351
    %v353 = vpop.f32.mrb[0].mxu0
    %v354 = vadd.f32 %v128, %v353
    %355 = vdwg.mxu0
    %356 = vmatprep.subr.bf16.mxu0 %v212
    %357 = vmatpush1.bf16.msra.mxu0 %v211
    %358 = vmatprep.subr.bf16.mxu0 %v218
    %359 = vmatpush1.bf16.msra.mxu0 %v217
    %360 = vmatprep.subr.bf16.mxu0 %v224
    %361 = vmatpush1.bf16.msra.mxu0 %v223
    %362 = vmatprep.subr.bf16.mxu0 0
    %363 = vmatpush1.bf16.msra.mxu0 0
    %364 = vmatprep.subr.bf16.mxu0 0
    %365 = vmatpush1.bf16.msra.mxu0 0
    %366 = vmatprep.subr.bf16.mxu0 0
    %367 = vmatpush1.bf16.msra.mxu0 0
    %368 = vmatprep.subr.bf16.mxu0 0
    %369 = vmatpush1.bf16.msra.mxu0 0
    %370 = vmatprep.subr.bf16.mxu0 0
    %371 = vmatpush1.bf16.msra.mxu0 0
    %372 = vmatprep.subr.bf16.mxu0 0
    %373 = vmatpush1.bf16.msra.mxu0 0
    %374 = vmatprep.subr.bf16.mxu0 0
    %375 = vmatpush1.bf16.msra.mxu0 0
    %376 = vmatprep.subr.bf16.mxu0 0
    %377 = vmatpush1.bf16.msra.mxu0 0
    %378 = vmatprep.subr.bf16.mxu0 0
    %379 = vmatpush1.bf16.msra.mxu0 0
    %380 = vmatprep.subr.bf16.mxu0 0
    %381 = vmatpush1.bf16.msra.mxu0 0
    %382 = vmatprep.subr.bf16.mxu0 0
    %383 = vmatpush1.bf16.msra.mxu0 0
    %384 = vmatprep.subr.bf16.mxu0 0
    %385 = vmatpush1.bf16.msra.mxu0 0
    %386 = vmatprep.subr.bf16.mxu0 0
    %387 = vmatpush1.bf16.msra.mxu0 0
    %388 = vmatprep.mubr.bf16.mxu0 0
    %389 = vmatmul.mubr.bf16.gmra.mrb[0].mxu0 %v245
    %v390 = vpop.f32.mrb[0].mxu0
    %v391 = vadd.f32 %v132, %v390
    %v392 = vpop.f32.mrb[0].mxu0
    %v393 = vadd.f32 %v136, %v392
    %v394 = vpop.f32.mrb[0].mxu0
    %v395 = vadd.f32 %v132, %v394
    %v396 = vpop.f32.mrb[0].mxu0
    %v397 = vadd.f32 %v136, %v396
    %398 = vmatprep.mubr.bf16.mxu0 0
    %399 = vmatmul.mubr.bf16.gmra.mrb[0].mxu0 %v248
    %v400 = vpop.f32.mrb[0].mxu0
    %v401 = vadd.f32 %v132, %v400
    %v402 = vpop.f32.mrb[0].mxu0
    %v403 = vadd.f32 %v136, %v402
    %v404 = vpop.f32.mrb[0].mxu0
    %v405 = vadd.f32 %v132, %v404
    %v406 = vpop.f32.mrb[0].mxu0
    %v407 = vadd.f32 %v136, %v406
    %408 = vdwg.mxu0
    %v409 = vmax.f32 %v285, 0.0
    %v410 = vmax.f32 %v287, 0.0
    %v411 = vmax.f32 %v338, 0.0
    %v412 = vmax.f32 %v340, 0.0
    %v413 = vmax.f32 %v391, 0.0
    %v414 = vmax.f32 %v393, 0.0
    %v415 = vmax.f32 %v289, 0.0
    %v416 = vmax.f32 %v291, 0.0
    %v417 = vmax.f32 %v342, 0.0
    %v418 = vmax.f32 %v344, 0.0
    %v419 = vmax.f32 %v395, 0.0
    %v420 = vmax.f32 %v397, 0.0
    %v421 = vmax.f32 %v295, 0.0
    %v422 = vmax.f32 %v297, 0.0
    %v423 = vmax.f32 %v348, 0.0
    %v424 = vmax.f32 %v350, 0.0
    %v425 = vmax.f32 %v401, 0.0
    %v426 = vmax.f32 %v403, 0.0
    %v427 = vmax.f32 %v299, 0.0
    %v428 = vmax.f32 %v301, 0.0
    %v429 = vmax.f32 %v352, 0.0
    %v430 = vmax.f32 %v354, 0.0
    %v431 = vmax.f32 %v405, 0.0
    %v432 = vmax.f32 %v407, 0.0
    %v433 = vld [vmem:[#allocation2] sm:$0xff]
    %v434 = vld [vmem:[#allocation2 + $0x8] sm:$0xf]
    %v435 = vadd.f32 %v409, %v415
    %v436 = vrot.slane %v435, 4
    %v437 = vadd.f32 %v435, %v436
    %v438 = vrot.slane %v437, 2
    %v439 = vadd.f32 %v437, %v438
    %v440 = vrot.slane %v439, 1
    %v441 = vadd.f32 %v439, %v440
    %v442 = vadd.f32 %v410, %v416
    %v443 = vrot.slane %v442, 4
    %v444 = vadd.f32 %v442, %v443
    %v445 = vrot.slane %v444, 2
    %v446 = vadd.f32 %v444, %v445
    %v447 = vrot.slane %v446, 1
    %v448 = vadd.f32 %v446, %v447
    %v449 = vadd.f32 %v411, %v417
    %v450 = vrot.slane %v449, 4
    %v451 = vadd.f32 %v449, %v450
    %v452 = vrot.slane %v451, 2
    %v453 = vadd.f32 %v451, %v452
    %v454 = vrot.slane %v453, 1
    %v455 = vadd.f32 %v453, %v454
    %v456 = vadd.f32 %v412, %v418
    %v457 = vrot.slane %v456, 4
    %v458 = vadd.f32 %v456, %v457
    %v459 = vrot.slane %v458, 2
    %v460 = vadd.f32 %v458, %v459
    %v461 = vrot.slane %v460, 1
    %v462 = vadd.f32 %v460, %v461
    %v463 = vadd.f32 %v413, %v419
    %v464 = vrot.slane %v463, 4
    %v465 = vadd.f32 %v463, %v464
    %v466 = vrot.slane %v465, 2
    %v467 = vadd.f32 %v465, %v466
    %v468 = vrot.slane %v467, 1
    %v469 = vadd.f32 %v467, %v468
    %v470 = vadd.f32 %v414, %v420
    %v471 = vrot.slane %v470, 4
    %v472 = vadd.f32 %v470, %v471
    %v473 = vrot.slane %v472, 2
    %v474 = vadd.f32 %v472, %v473
    %v475 = vrot.slane %v474, 1
    %v476 = vadd.f32 %v474, %v475
    %v477 = vadd.f32 %v421, %v427
    %v478 = vrot.slane %v477, 4
    %v479 = vadd.f32 %v477, %v478
    %v480 = vrot.slane %v479, 2
    %v481 = vadd.f32 %v479, %v480
    %v482 = vrot.slane %v481, 1
    %v483 = vadd.f32 %v481, %v482
    %v484 = vadd.f32 %v422, %v428
    %v485 = vrot.slane %v484, 4
    %v486 = vadd.f32 %v484, %v485
    %v487 = vrot.slane %v486, 2
    %v488 = vadd.f32 %v486, %v487
    %v489 = vrot.slane %v488, 1
    %v490 = vadd.f32 %v488, %v489
    %v491 = vadd.f32 %v423, %v429
    %v492 = vrot.slane %v491, 4
    %v493 = vadd.f32 %v491, %v492
    %v494 = vrot.slane %v493, 2
    %v495 = vadd.f32 %v493, %v494
    %v496 = vrot.slane %v495, 1
    %v497 = vadd.f32 %v495, %v496
    %v498 = vadd.f32 %v424, %v430
    %v499 = vrot.slane %v498, 4
    %v500 = vadd.f32 %v498, %v499
    %v501 = vrot.slane %v500, 2
    %v502 = vadd.f32 %v500, %v501
    %v503 = vrot.slane %v502, 1
    %v504 = vadd.f32 %v502, %v503
    %v505 = vadd.f32 %v425, %v431
    %v506 = vrot.slane %v505, 4
    %v507 = vadd.f32 %v505, %v506
    %v508 = vrot.slane %v507, 2
    %v509 = vadd.f32 %v507, %v508
    %v510 = vrot.slane %v509, 1
    %v511 = vadd.f32 %v509, %v510
    %v512 = vadd.f32 %v426, %v432
    %v513 = vrot.slane %v512, 4
    %v514 = vadd.f32 %v512, %v513
    %v515 = vrot.slane %v514, 2
    %v516 = vadd.f32 %v514, %v515
    %v517 = vrot.slane %v516, 1
    %v518 = vadd.f32 %v516, %v517
    %v531 = vcombine.low %v441, %v448
    %v532 = vcombine.low %v455, %v462
    %v534 = vunpack.c.l.s4 1983009808
    %v535 = vunpack.c.0.s8 %v534
    %v536 = vlaneseq
    %v537 = vshrl.u32 %v536, 7
    %v538 = vsub.s32 %v535, %v537
    %v539 = vrot.slane %v531, %v538
    %v541 = vunpack.c.l.s4 1983009808
    %v542 = vunpack.c.0.s8 %v541
    %v543 = vlaneseq
    %v544 = vshrl.u32 %v543, 7
    %v545 = vsub.s32 %v542, %v544
    %v546 = vrot.slane %v532, %v545
    %v547 = vcombine.low %v539, %v546
    %v548 = vcombine.low %v469, %v476
    %v550 = vunpack.c.l.s4 1983009808
    %v551 = vunpack.c.0.s8 %v550
    %v552 = vlaneseq
    %v553 = vshrl.u32 %v552, 7
    %v554 = vsub.s32 %v551, %v553
    %v555 = vrot.slane %v548, %v554
    %v556 = vcombine.low %v483, %v490
    %v557 = vcombine.low %v497, %v504
    %v559 = vunpack.c.l.s4 1983009808
    %v560 = vunpack.c.0.s8 %v559
    %v561 = vlaneseq
    %v562 = vshrl.u32 %v561, 7
    %v563 = vsub.s32 %v560, %v562
    %v564 = vrot.slane %v556, %v563
    %v566 = vunpack.c.l.s4 1983009808
    %v567 = vunpack.c.0.s8 %v566
    %v568 = vlaneseq
    %v569 = vshrl.u32 %v568, 7
    %v570 = vsub.s32 %v567, %v569
    %v571 = vrot.slane %v557, %v570
    %v572 = vcombine.low %v564, %v571
    %v573 = vcombine.low %v511, %v518
    %v575 = vunpack.c.l.s4 1983009808
    %v576 = vunpack.c.0.s8 %v575
    %v577 = vlaneseq
    %v578 = vshrl.u32 %v577, 7
    %v579 = vsub.s32 %v576, %v578
    %v580 = vrot.slane %v573, %v579
    %vm581 = vcmask 1044484
    %v582 = vsel %vm581, %v547, %v547
    %vm583 = vcmask 1046534
    %v584 = vsel %vm583, %v547, %v582
    %v585 = vrot.slane %v572, 7
    %vm586 = vcmask 1041409
    %v587 = vsel %vm586, %v585, %v584
    %vm588 = vcmask 1043459
    %v589 = vsel %vm588, %v585, %v587
    %vm590 = vcmask 1045509
    %v591 = vsel %vm590, %v585, %v589
    %vm592 = vcmask 1047559
    %v593 = vsel %vm592, %v585, %v591
    %v594 = vsel %vm581, %v555, %v555
    %v595 = vsel %vm583, %v555, %v594
    %v596 = vrot.slane %v580, 7
    %v597 = vsel %vm586, %v596, %v595
    %v598 = vsel %vm588, %v596, %v597
    %v599 = vsel %vm590, %v596, %v598
    %v600 = vsel %vm592, %v596, %v599
    %v603 = vadd.f32 %v433, %v593
    %v604 = vadd.f32 %v434, %v600
    %605 = vst [vmem:[#allocation2] sm:$0xff] %v603
    %606 = vst [vmem:[#allocation2 + $0x8] sm:$0xf] %v604
    // Predicated region
    $region50: #{tpu_custom_call.1} parent=1 // pred_check
      %p607 = pneg %p83
    $region51: #{tpu_custom_call.1} parent=1 // pred_check_branch
      %609 = sbr.rel (%p607) target = $region53
    $region52: #{tpu_custom_call.1} parent=1 // pred_region
      %v610 = vld [vmem:[#allocation2] sm:$0xff]
      %v611 = vld [vmem:[#allocation2 + $0x8] sm:$0xf]
      %v612 = vmul.f32 %v610, 0.0625
      %v613 = vmul.f32 %v611, 0.0625
      %v616 = vcombine.high %v612, %v612
      %v618 = vunpack.c.l.s4 1983009808
      %v619 = vunpack.c.0.s8 %v618
      %v620 = vlaneseq
      %v621 = vshrl.u32 %v620, 7
      %v622 = vsub.s32 %v619, %v621
      %v623 = vrot.slane %v612, %v622
      %v625 = vunpack.c.l.s4 1983009808
      %v626 = vunpack.c.0.s8 %v625
      %v627 = vlaneseq
      %v628 = vshrl.u32 %v627, 7
      %v629 = vsub.s32 %v626, %v628
      %v630 = vrot.slane %v616, %v629
      %v631 = vcombine.high %v623, %v623
      %v632 = vcombine.high %v630, %v630
      %v634 = vunpack.c.l.s4 1983009808
      %v635 = vunpack.c.0.s8 %v634
      %v636 = vlaneseq
      %v637 = vshrl.u32 %v636, 7
      %v638 = vsub.s32 %v635, %v637
      %v639 = vrot.slane %v613, %v638
      %v640 = vcombine.high %v639, %v639
      %v647 = vpack.c.bf16 %v623, %v623
      %v648 = vpack.c.bf16 %v631, %v631
      %v649 = vpack.c.bf16 %v630, %v630
      %v650 = vpack.c.bf16 %v632, %v632
      %v651 = vpack.c.bf16 %v639, %v639
      %v652 = vpack.c.bf16 %v640, %v640
      %v653 = vld [vmem:[#allocation8] sm:$0xff]
      %v654 = vld [vmem:[#allocation8 + $0x8] sm:$0xff]
      %v655 = vld [vmem:[#allocation8 + $0x10] sm:$0xff]
      %v656 = vld [vmem:[#allocation8 + $0x18] sm:$0xff]
      %v657 = vld [vmem:[#allocation8 + $0x20] sm:$0xff]
      %v658 = vld [vmem:[#allocation8 + $0x28] sm:$0xff]
      %v659 = vld [vmem:[#allocation8 + $0x30] sm:$0xff]
      %v660 = vld [vmem:[#allocation8 + $0x38] sm:$0xff]
      %v661 = vld [vmem:[#allocation8 + $0x40] sm:$0xff]
      %v662 = vld [vmem:[#allocation8 + $0x48] sm:$0xff]
      %v663 = vld [vmem:[#allocation8 + $0x50] sm:$0xff]
      %v664 = vld [vmem:[#allocation8 + $0x58] sm:$0xff]
      %v665 = vld [vmem:[#allocation8 + $0x60] sm:$0xff]
      %v666 = vld [vmem:[#allocation8 + $0x68] sm:$0xff]
      %v667 = vld [vmem:[#allocation8 + $0x70] sm:$0xff]
      %v668 = vld [vmem:[#allocation8 + $0x78] sm:$0xff]
      %v669 = vld [vmem:[#allocation8 + $0x80] sm:$0xff]
      %v670 = vld [vmem:[#allocation8 + $0x88] sm:$0xff]
      %v671 = vld [vmem:[#allocation8 + $0x90] sm:$0xff]
      %v672 = vld [vmem:[#allocation8 + $0x98] sm:$0xff]
      %v673 = vld [vmem:[#allocation8 + $0xa0] sm:$0xff]
      %v674 = vld [vmem:[#allocation8 + $0xa8] sm:$0xff]
      %v675 = vld [vmem:[#allocation8 + $0xb0] sm:$0xff]
      %v676 = vld [vmem:[#allocation8 + $0xb8] sm:$0xff]
      %v677 = vld [vmem:[#allocation8 + $0xc0] sm:$0xff]
      %v678 = vld [vmem:[#allocation8 + $0xc8] sm:$0xff]
      %v679 = vld [vmem:[#allocation8 + $0xd0] sm:$0xff]
      %v680 = vld [vmem:[#allocation8 + $0xd8] sm:$0xff]
      %v681 = vld [vmem:[#allocation8 + $0xe0] sm:$0xff]
      %v682 = vld [vmem:[#allocation8 + $0xe8] sm:$0xff]
      %v683 = vld [vmem:[#allocation8 + $0xf0] sm:$0xff]
      %v684 = vld [vmem:[#allocation8 + $0xf8] sm:$0xff]
      %v685 = vld [vmem:[#allocation8 + $0x100] sm:$0xff]
      %v686 = vld [vmem:[#allocation8 + $0x108] sm:$0xff]
      %v687 = vld [vmem:[#allocation8 + $0x110] sm:$0xff]
      %v688 = vld [vmem:[#allocation8 + $0x118] sm:$0xff]
      %v689 = vld [vmem:[#allocation8 + $0x120] sm:$0xff]
      %v690 = vld [vmem:[#allocation8 + $0x128] sm:$0xff]
      %v691 = vld [vmem:[#allocation8 + $0x130] sm:$0xff]
      %v692 = vld [vmem:[#allocation8 + $0x138] sm:$0xff]
      %v693 = vld [vmem:[#allocation8 + $0x140] sm:$0xff]
      %v694 = vld [vmem:[#allocation8 + $0x148] sm:$0xff]
      %v695 = vld [vmem:[#allocation8 + $0x150] sm:$0xff]
      %v696 = vld [vmem:[#allocation8 + $0x158] sm:$0xff]
      %v697 = vld [vmem:[#allocation8 + $0x160] sm:$0xff]
      %v698 = vld [vmem:[#allocation8 + $0x168] sm:$0xff]
      %v699 = vld [vmem:[#allocation8 + $0x170] sm:$0xff]
      %v700 = vld [vmem:[#allocation8 + $0x178] sm:$0xff]
      %v701 = vld [vmem:[#allocation8 + $0x180] sm:$0xff]
      %v702 = vld [vmem:[#allocation8 + $0x188] sm:$0xff]
      %v703 = vld [vmem:[#allocation8 + $0x190] sm:$0xff]
      %v704 = vld [vmem:[#allocation8 + $0x198] sm:$0xff]
      %v705 = vld [vmem:[#allocation8 + $0x1a0] sm:$0xff]
      %v706 = vld [vmem:[#allocation8 + $0x1a8] sm:$0xff]
      %v707 = vld [vmem:[#allocation8 + $0x1b0] sm:$0xff]
      %v708 = vld [vmem:[#allocation8 + $0x1b8] sm:$0xff]
      %v709 = vld [vmem:[#allocation8 + $0x1c0] sm:$0xff]
      %v710 = vld [vmem:[#allocation8 + $0x1c8] sm:$0xff]
      %v711 = vld [vmem:[#allocation8 + $0x1d0] sm:$0xff]
      %v712 = vld [vmem:[#allocation8 + $0x1d8] sm:$0xff]
      %v713 = vld [vmem:[#allocation8 + $0x1e0] sm:$0xff]
      %v714 = vld [vmem:[#allocation8 + $0x1e8] sm:$0xff]
      %v715 = vld [vmem:[#allocation8 + $0x1f0] sm:$0xff]
      %v716 = vld [vmem:[#allocation8 + $0x1f8] sm:$0xff]
      %v717 = vld [vmem:[#allocation8 + $0x200] sm:$0xff]
      %v718 = vld [vmem:[#allocation8 + $0x208] sm:$0xff]
      %v719 = vld [vmem:[#allocation8 + $0x210] sm:$0xff]
      %v720 = vld [vmem:[#allocation8 + $0x218] sm:$0xff]
      %v721 = vld [vmem:[#allocation8 + $0x220] sm:$0xff]
      %v722 = vld [vmem:[#allocation8 + $0x228] sm:$0xff]
      %v723 = vld [vmem:[#allocation8 + $0x230] sm:$0xff]
      %v724 = vld [vmem:[#allocation8 + $0x238] sm:$0xff]
      %v725 = vld [vmem:[#allocation8 + $0x240] sm:$0xff]
      %v726 = vld [vmem:[#allocation8 + $0x248] sm:$0xff]
      %v727 = vld [vmem:[#allocation8 + $0x250] sm:$0xff]
      %v728 = vld [vmem:[#allocation8 + $0x258] sm:$0xff]
      %v729 = vld [vmem:[#allocation8 + $0x260] sm:$0xff]
      %v730 = vld [vmem:[#allocation8 + $0x268] sm:$0xff]
      %v731 = vld [vmem:[#allocation8 + $0x270] sm:$0xff]
      %v732 = vld [vmem:[#allocation8 + $0x278] sm:$0xff]
      %v733 = vld [vmem:[#allocation8 + $0x280] sm:$0xff]
      %v734 = vld [vmem:[#allocation8 + $0x288] sm:$0xff]
      %v735 = vld [vmem:[#allocation8 + $0x290] sm:$0xff]
      %v736 = vld [vmem:[#allocation8 + $0x298] sm:$0xff]
      %v737 = vld [vmem:[#allocation8 + $0x2a0] sm:$0xff]
      %v738 = vld [vmem:[#allocation8 + $0x2a8] sm:$0xff]
      %v739 = vld [vmem:[#allocation8 + $0x2b0] sm:$0xff]
      %v740 = vld [vmem:[#allocation8 + $0x2b8] sm:$0xff]
      %v741 = vld [vmem:[#allocation8 + $0x2c0] sm:$0xff]
      %v742 = vld [vmem:[#allocation8 + $0x2c8] sm:$0xff]
      %v743 = vld [vmem:[#allocation8 + $0x2d0] sm:$0xff]
      %v744 = vld [vmem:[#allocation8 + $0x2d8] sm:$0xff]
      %v745 = vld [vmem:[#allocation8 + $0x2e0] sm:$0xff]
      %v746 = vld [vmem:[#allocation8 + $0x2e8] sm:$0xff]
      %v747 = vld [vmem:[#allocation8 + $0x2f0] sm:$0xff]
      %v748 = vld [vmem:[#allocation8 + $0x2f8] sm:$0xff]
      %v749 = vld [vmem:[%s4] sm:$0x3]
      %v751 = vlaneseq
      %v752 = vshrl.u32 %v751, 7
      %v753 = vsub.s32 0, %v752
      %v754 = vrot.slane %v749, %v753
      %v755 = vlaneseq
      %v756 = vshrl.u32 %v755, 7
      %v757 = vsub.s32 1, %v756
      %v758 = vrot.slane %v749, %v757
      %v857 = vunpack.c.l.b16 %v653
      %v858 = vunpack.c.h.b16 %v653
      %v859 = vunpack.c.l.b16 %v654
      %v860 = vunpack.c.h.b16 %v654
      %v861 = vunpack.c.l.b16 %v655
      %v862 = vunpack.c.h.b16 %v655
      %v863 = vunpack.c.l.b16 %v656
      %v864 = vunpack.c.h.b16 %v656
      %v865 = vunpack.c.l.b16 %v657
      %v866 = vunpack.c.h.b16 %v657
      %v867 = vunpack.c.l.b16 %v658
      %v868 = vunpack.c.h.b16 %v658
      %v869 = vunpack.c.l.b16 %v659
      %v870 = vunpack.c.h.b16 %v659
      %v871 = vunpack.c.l.b16 %v660
      %v872 = vunpack.c.h.b16 %v660
      %v873 = vunpack.c.l.b16 %v661
      %v874 = vunpack.c.h.b16 %v661
      %v875 = vunpack.c.l.b16 %v662
      %v876 = vunpack.c.h.b16 %v662
      %v877 = vunpack.c.l.b16 %v663
      %v878 = vunpack.c.h.b16 %v663
      %v879 = vunpack.c.l.b16 %v664
      %v880 = vunpack.c.h.b16 %v664
      %v881 = vunpack.c.l.b16 %v665
      %v882 = vunpack.c.h.b16 %v665
      %v883 = vunpack.c.l.b16 %v666
      %v884 = vunpack.c.h.b16 %v666
      %v885 = vunpack.c.l.b16 %v667
      %v886 = vunpack.c.h.b16 %v667
      %v887 = vunpack.c.l.b16 %v668
      %v888 = vunpack.c.h.b16 %v668
      %v889 = vunpack.c.l.b16 %v669
      %v890 = vunpack.c.h.b16 %v669
      %v891 = vunpack.c.l.b16 %v670
      %v892 = vunpack.c.h.b16 %v670
      %v893 = vunpack.c.l.b16 %v671
      %v894 = vunpack.c.h.b16 %v671
      %v895 = vunpack.c.l.b16 %v672
      %v896 = vunpack.c.h.b16 %v672
      %v897 = vunpack.c.l.b16 %v673
      %v898 = vunpack.c.h.b16 %v673
      %v899 = vunpack.c.l.b16 %v674
      %v900 = vunpack.c.h.b16 %v674
      %v901 = vunpack.c.l.b16 %v675
      %v902 = vunpack.c.h.b16 %v675
      %v903 = vunpack.c.l.b16 %v676
      %v904 = vunpack.c.h.b16 %v676
      %v905 = vunpack.c.l.b16 %v677
      %v906 = vunpack.c.h.b16 %v677
      %v907 = vunpack.c.l.b16 %v678
      %v908 = vunpack.c.h.b16 %v678
      %v909 = vunpack.c.l.b16 %v679
      %v910 = vunpack.c.h.b16 %v679
      %v911 = vunpack.c.l.b16 %v680
      %v912 = vunpack.c.h.b16 %v680
      %v913 = vunpack.c.l.b16 %v681
      %v914 = vunpack.c.h.b16 %v681
      %v915 = vunpack.c.l.b16 %v682
      %v916 = vunpack.c.h.b16 %v682
      %v917 = vunpack.c.l.b16 %v683
      %v918 = vunpack.c.h.b16 %v683
      %v919 = vunpack.c.l.b16 %v684
      %v920 = vunpack.c.h.b16 %v684
      %v921 = vunpack.c.l.b16 %v685
      %v922 = vunpack.c.h.b16 %v685
      %v923 = vunpack.c.l.b16 %v686
      %v924 = vunpack.c.h.b16 %v686
      %v925 = vunpack.c.l.b16 %v687
      %v926 = vunpack.c.h.b16 %v687
      %v927 = vunpack.c.l.b16 %v688
      %v928 = vunpack.c.h.b16 %v688
      %v929 = vunpack.c.l.b16 %v689
      %v930 = vunpack.c.h.b16 %v689
      %v931 = vunpack.c.l.b16 %v690
      %v932 = vunpack.c.h.b16 %v690
      %v933 = vunpack.c.l.b16 %v691
      %v934 = vunpack.c.h.b16 %v691
      %v935 = vunpack.c.l.b16 %v692
      %v936 = vunpack.c.h.b16 %v692
      %v937 = vunpack.c.l.b16 %v693
      %v938 = vunpack.c.h.b16 %v693
      %v939 = vunpack.c.l.b16 %v694
      %v940 = vunpack.c.h.b16 %v694
      %v941 = vunpack.c.l.b16 %v695
      %v942 = vunpack.c.h.b16 %v695
      %v943 = vunpack.c.l.b16 %v696
      %v944 = vunpack.c.h.b16 %v696
      %v945 = vunpack.c.l.b16 %v697
      %v946 = vunpack.c.h.b16 %v697
      %v947 = vunpack.c.l.b16 %v698
      %v948 = vunpack.c.h.b16 %v698
      %v949 = vunpack.c.l.b16 %v699
      %v950 = vunpack.c.h.b16 %v699
      %v951 = vunpack.c.l.b16 %v700
      %v952 = vunpack.c.h.b16 %v700
      %v953 = vunpack.c.l.b16 %v701
      %v954 = vunpack.c.h.b16 %v701
      %v955 = vunpack.c.l.b16 %v702
      %v956 = vunpack.c.h.b16 %v702
      %v957 = vunpack.c.l.b16 %v703
      %v958 = vunpack.c.h.b16 %v703
      %v959 = vunpack.c.l.b16 %v704
      %v960 = vunpack.c.h.b16 %v704
      %v961 = vunpack.c.l.b16 %v705
      %v962 = vunpack.c.h.b16 %v705
      %v963 = vunpack.c.l.b16 %v706
      %v964 = vunpack.c.h.b16 %v706
      %v965 = vunpack.c.l.b16 %v707
      %v966 = vunpack.c.h.b16 %v707
      %v967 = vunpack.c.l.b16 %v708
      %v968 = vunpack.c.h.b16 %v708
      %v969 = vunpack.c.l.b16 %v709
      %v970 = vunpack.c.h.b16 %v709
      %v971 = vunpack.c.l.b16 %v710
      %v972 = vunpack.c.h.b16 %v710
      %v973 = vunpack.c.l.b16 %v711
      %v974 = vunpack.c.h.b16 %v711
      %v975 = vunpack.c.l.b16 %v712
      %v976 = vunpack.c.h.b16 %v712
      %v977 = vunpack.c.l.b16 %v713
      %v978 = vunpack.c.h.b16 %v713
      %v979 = vunpack.c.l.b16 %v714
      %v980 = vunpack.c.h.b16 %v714
      %v981 = vunpack.c.l.b16 %v715
      %v982 = vunpack.c.h.b16 %v715
      %v983 = vunpack.c.l.b16 %v716
      %v984 = vunpack.c.h.b16 %v716
      %v985 = vunpack.c.l.b16 %v717
      %v986 = vunpack.c.h.b16 %v717
      %v987 = vunpack.c.l.b16 %v718
      %v988 = vunpack.c.h.b16 %v718
      %v989 = vunpack.c.l.b16 %v719
      %v990 = vunpack.c.h.b16 %v719
      %v991 = vunpack.c.l.b16 %v720
      %v992 = vunpack.c.h.b16 %v720
      %v993 = vunpack.c.l.b16 %v721
      %v994 = vunpack.c.h.b16 %v721
      %v995 = vunpack.c.l.b16 %v722
      %v996 = vunpack.c.h.b16 %v722
      %v997 = vunpack.c.l.b16 %v723
      %v998 = vunpack.c.h.b16 %v723
      %v999 = vunpack.c.l.b16 %v724
      %v1000 = vunpack.c.h.b16 %v724
      %v1001 = vunpack.c.l.b16 %v725
      %v1002 = vunpack.c.h.b16 %v725
      %v1003 = vunpack.c.l.b16 %v726
      %v1004 = vunpack.c.h.b16 %v726
      %v1005 = vunpack.c.l.b16 %v727
      %v1006 = vunpack.c.h.b16 %v727
      %v1007 = vunpack.c.l.b16 %v728
      %v1008 = vunpack.c.h.b16 %v728
      %v1009 = vunpack.c.l.b16 %v729
      %v1010 = vunpack.c.h.b16 %v729
      %v1011 = vunpack.c.l.b16 %v730
      %v1012 = vunpack.c.h.b16 %v730
      %v1013 = vunpack.c.l.b16 %v731
      %v1014 = vunpack.c.h.b16 %v731
      %v1015 = vunpack.c.l.b16 %v732
      %v1016 = vunpack.c.h.b16 %v732
      %v1017 = vunpack.c.l.b16 %v733
      %v1018 = vunpack.c.h.b16 %v733
      %v1019 = vunpack.c.l.b16 %v734
      %v1020 = vunpack.c.h.b16 %v734
      %v1021 = vunpack.c.l.b16 %v735
      %v1022 = vunpack.c.h.b16 %v735
      %v1023 = vunpack.c.l.b16 %v736
      %v1024 = vunpack.c.h.b16 %v736
      %v1025 = vunpack.c.l.b16 %v737
      %v1026 = vunpack.c.h.b16 %v737
      %v1027 = vunpack.c.l.b16 %v738
      %v1028 = vunpack.c.h.b16 %v738
      %v1029 = vunpack.c.l.b16 %v739
      %v1030 = vunpack.c.h.b16 %v739
      %v1031 = vunpack.c.l.b16 %v740
      %v1032 = vunpack.c.h.b16 %v740
      %v1033 = vunpack.c.l.b16 %v741
      %v1034 = vunpack.c.h.b16 %v741
      %v1035 = vunpack.c.l.b16 %v742
      %v1036 = vunpack.c.h.b16 %v742
      %v1037 = vunpack.c.l.b16 %v743
      %v1038 = vunpack.c.h.b16 %v743
      %v1039 = vunpack.c.l.b16 %v744
      %v1040 = vunpack.c.h.b16 %v744
      %v1041 = vunpack.c.l.b16 %v745
      %v1042 = vunpack.c.h.b16 %v745
      %v1043 = vunpack.c.l.b16 %v746
      %v1044 = vunpack.c.h.b16 %v746
      %v1045 = vunpack.c.l.b16 %v747
      %v1046 = vunpack.c.h.b16 %v747
      %v1047 = vunpack.c.l.b16 %v748
      %v1048 = vunpack.c.h.b16 %v748
      %v1049 = vpack.c.b16 %v859, %v857
      %v1050 = vpack.c.b16 %v860, %v858
      %v1051 = vpack.c.b16 %v863, %v861
      %v1052 = vpack.c.b16 %v864, %v862
      %v1053 = vpack.c.b16 %v867, %v865
      %v1054 = vpack.c.b16 %v868, %v866
      %v1055 = vpack.c.b16 %v871, %v869
      %v1056 = vpack.c.b16 %v872, %v870
      %v1057 = vpack.c.b16 %v875, %v873
      %v1058 = vpack.c.b16 %v876, %v874
      %v1059 = vpack.c.b16 %v879, %v877
      %v1060 = vpack.c.b16 %v880, %v878
      %v1061 = vpack.c.b16 %v883, %v881
      %v1062 = vpack.c.b16 %v884, %v882
      %v1063 = vpack.c.b16 %v887, %v885
      %v1064 = vpack.c.b16 %v888, %v886
      %v1065 = vpack.c.b16 %v891, %v889
      %v1066 = vpack.c.b16 %v892, %v890
      %v1067 = vpack.c.b16 %v895, %v893
      %v1068 = vpack.c.b16 %v896, %v894
      %v1069 = vpack.c.b16 %v899, %v897
      %v1070 = vpack.c.b16 %v900, %v898
      %v1071 = vpack.c.b16 %v903, %v901
      %v1072 = vpack.c.b16 %v904, %v902
      %v1073 = vpack.c.b16 %v907, %v905
      %v1074 = vpack.c.b16 %v908, %v906
      %v1075 = vpack.c.b16 %v911, %v909
      %v1076 = vpack.c.b16 %v912, %v910
      %v1077 = vpack.c.b16 %v915, %v913
      %v1078 = vpack.c.b16 %v916, %v914
      %v1079 = vpack.c.b16 %v919, %v917
      %v1080 = vpack.c.b16 %v920, %v918
      %v1081 = vpack.c.b16 %v923, %v921
      %v1082 = vpack.c.b16 %v924, %v922
      %v1083 = vpack.c.b16 %v927, %v925
      %v1084 = vpack.c.b16 %v928, %v926
      %v1085 = vpack.c.b16 %v931, %v929
      %v1086 = vpack.c.b16 %v932, %v930
      %v1087 = vpack.c.b16 %v935, %v933
      %v1088 = vpack.c.b16 %v936, %v934
      %v1089 = vpack.c.b16 %v939, %v937
      %v1090 = vpack.c.b16 %v940, %v938
      %v1091 = vpack.c.b16 %v943, %v941
      %v1092 = vpack.c.b16 %v944, %v942
      %v1093 = vpack.c.b16 %v947, %v945
      %v1094 = vpack.c.b16 %v948, %v946
      %v1095 = vpack.c.b16 %v951, %v949
      %v1096 = vpack.c.b16 %v952, %v950
      %v1097 = vpack.c.b16 %v955, %v953
      %v1098 = vpack.c.b16 %v956, %v954
      %v1099 = vpack.c.b16 %v959, %v957
      %v1100 = vpack.c.b16 %v960, %v958
      %v1101 = vpack.c.b16 %v963, %v961
      %v1102 = vpack.c.b16 %v964, %v962
      %v1103 = vpack.c.b16 %v967, %v965
      %v1104 = vpack.c.b16 %v968, %v966
      %v1105 = vpack.c.b16 %v971, %v969
      %v1106 = vpack.c.b16 %v972, %v970
      %v1107 = vpack.c.b16 %v975, %v973
      %v1108 = vpack.c.b16 %v976, %v974
      %v1109 = vpack.c.b16 %v979, %v977
      %v1110 = vpack.c.b16 %v980, %v978
      %v1111 = vpack.c.b16 %v983, %v981
      %v1112 = vpack.c.b16 %v984, %v982
      %v1113 = vpack.c.b16 %v987, %v985
      %v1114 = vpack.c.b16 %v988, %v986
      %v1115 = vpack.c.b16 %v991, %v989
      %v1116 = vpack.c.b16 %v992, %v990
      %v1117 = vpack.c.b16 %v995, %v993
      %v1118 = vpack.c.b16 %v996, %v994
      %v1119 = vpack.c.b16 %v999, %v997
      %v1120 = vpack.c.b16 %v1000, %v998
      %v1121 = vpack.c.b16 %v1003, %v1001
      %v1122 = vpack.c.b16 %v1004, %v1002
      %v1123 = vpack.c.b16 %v1007, %v1005
      %v1124 = vpack.c.b16 %v1008, %v1006
      %v1125 = vpack.c.b16 %v1011, %v1009
      %v1126 = vpack.c.b16 %v1012, %v1010
      %v1127 = vpack.c.b16 %v1015, %v1013
      %v1128 = vpack.c.b16 %v1016, %v1014
      %v1129 = vpack.c.b16 %v1019, %v1017
      %v1130 = vpack.c.b16 %v1020, %v1018
      %v1131 = vpack.c.b16 %v1023, %v1021
      %v1132 = vpack.c.b16 %v1024, %v1022
      %v1133 = vpack.c.b16 %v1027, %v1025
      %v1134 = vpack.c.b16 %v1028, %v1026
      %v1135 = vpack.c.b16 %v1031, %v1029
      %v1136 = vpack.c.b16 %v1032, %v1030
      %v1137 = vpack.c.b16 %v1035, %v1033
      %v1138 = vpack.c.b16 %v1036, %v1034
      %v1139 = vpack.c.b16 %v1039, %v1037
      %v1140 = vpack.c.b16 %v1040, %v1038
      %v1141 = vpack.c.b16 %v1043, %v1041
      %v1142 = vpack.c.b16 %v1044, %v1042
      %v1143 = vpack.c.b16 %v1047, %v1045
      %v1144 = vpack.c.b16 %v1048, %v1046
      %1241 = vmatprep.subr.bf16.mxu0 %v1050
      %1242 = vmatpush1.bf16.msra.mxu0 %v1049
      %1243 = vmatprep.subr.bf16.mxu0 %v1052
      %1244 = vmatpush1.bf16.msra.mxu0 %v1051
      %1245 = vmatprep.subr.bf16.mxu0 %v1054
      %1246 = vmatpush1.bf16.msra.mxu0 %v1053
      %1247 = vmatprep.subr.bf16.mxu0 %v1056
      %1248 = vmatpush1.bf16.msra.mxu0 %v1055
      %1249 = vmatprep.subr.bf16.mxu0 %v1058
      %1250 = vmatpush1.bf16.msra.mxu0 %v1057
      %1251 = vmatprep.subr.bf16.mxu0 %v1060
      %1252 = vmatpush1.bf16.msra.mxu0 %v1059
      %1253 = vmatprep.subr.bf16.mxu0 %v1062
      %1254 = vmatpush1.bf16.msra.mxu0 %v1061
      %1255 = vmatprep.subr.bf16.mxu0 %v1064
      %1256 = vmatpush1.bf16.msra.mxu0 %v1063
      %1257 = vmatprep.subr.bf16.mxu0 %v1066
      %1258 = vmatpush1.bf16.msra.mxu0 %v1065
      %1259 = vmatprep.subr.bf16.mxu0 %v1068
      %1260 = vmatpush1.bf16.msra.mxu0 %v1067
      %1261 = vmatprep.subr.bf16.mxu0 %v1070
      %1262 = vmatpush1.bf16.msra.mxu0 %v1069
      %1263 = vmatprep.subr.bf16.mxu0 %v1072
      %1264 = vmatpush1.bf16.msra.mxu0 %v1071
      %1265 = vmatprep.subr.bf16.mxu0 %v1074
      %1266 = vmatpush1.bf16.msra.mxu0 %v1073
      %1267 = vmatprep.subr.bf16.mxu0 %v1076
      %1268 = vmatpush1.bf16.msra.mxu0 %v1075
      %1269 = vmatprep.subr.bf16.mxu0 %v1078
      %1270 = vmatpush1.bf16.msra.mxu0 %v1077
      %1271 = vmatprep.subr.bf16.mxu0 %v1080
      %1272 = vmatpush1.bf16.msra.mxu0 %v1079
      %1273 = vmatprep.mubr.bf16.mxu0 %v648
      %1274 = vmatmul.mubr.bf16.gmra.mrb[0].mxu0 %v647
      %v1275 = vpop.f32.mrb[0].mxu0
      %v1276 = vadd.f32 %v754, %v1275
      %v1277 = vpop.f32.mrb[0].mxu0
      %v1278 = vadd.f32 %v758, %v1277
      %v1279 = vpop.f32.mrb[0].mxu0
      %v1280 = vpop.f32.mrb[0].mxu0
      %1281 = vdwg.mxu0
      %1282 = vmatprep.subr.bf16.mxu0 %v1082
      %1283 = vmatpush1.bf16.msra.mxu0 %v1081
      %1284 = vmatprep.subr.bf16.mxu0 %v1084
      %1285 = vmatpush1.bf16.msra.mxu0 %v1083
      %1286 = vmatprep.subr.bf16.mxu0 %v1086
      %1287 = vmatpush1.bf16.msra.mxu0 %v1085
      %1288 = vmatprep.subr.bf16.mxu0 %v1088
      %1289 = vmatpush1.bf16.msra.mxu0 %v1087
      %1290 = vmatprep.subr.bf16.mxu0 %v1090
      %1291 = vmatpush1.bf16.msra.mxu0 %v1089
      %1292 = vmatprep.subr.bf16.mxu0 %v1092
      %1293 = vmatpush1.bf16.msra.mxu0 %v1091
      %1294 = vmatprep.subr.bf16.mxu0 %v1094
      %1295 = vmatpush1.bf16.msra.mxu0 %v1093
      %1296 = vmatprep.subr.bf16.mxu0 %v1096
      %1297 = vmatpush1.bf16.msra.mxu0 %v1095
      %1298 = vmatprep.subr.bf16.mxu0 %v1098
      %1299 = vmatpush1.bf16.msra.mxu0 %v1097
      %1300 = vmatprep.subr.bf16.mxu0 %v1100
      %1301 = vmatpush1.bf16.msra.mxu0 %v1099
      %1302 = vmatprep.subr.bf16.mxu0 %v1102
      %1303 = vmatpush1.bf16.msra.mxu0 %v1101
      %1304 = vmatprep.subr.bf16.mxu0 %v1104
      %1305 = vmatpush1.bf16.msra.mxu0 %v1103
      %1306 = vmatprep.subr.bf16.mxu0 %v1106
      %1307 = vmatpush1.bf16.msra.mxu0 %v1105
      %1308 = vmatprep.subr.bf16.mxu0 %v1108
      %1309 = vmatpush1.bf16.msra.mxu0 %v1107
      %1310 = vmatprep.subr.bf16.mxu0 %v1110
      %1311 = vmatpush1.bf16.msra.mxu0 %v1109
      %1312 = vmatprep.subr.bf16.mxu0 %v1112
      %1313 = vmatpush1.bf16.msra.mxu0 %v1111
      %1314 = vmatprep.mubr.bf16.mxu0 %v650
      %1315 = vmatmul.mubr.bf16.gmra.mrb[0].mxu0 %v649
      %v1316 = vpop.f32.mrb[0].mxu0
      %v1317 = vadd.f32 %v1276, %v1316
      %v1318 = vpop.f32.mrb[0].mxu0
      %v1319 = vadd.f32 %v1278, %v1318
      %v1320 = vpop.f32.mrb[0].mxu0
      %v1321 = vpop.f32.mrb[0].mxu0
      %1322 = vdwg.mxu0
      %1323 = vmatprep.subr.bf16.mxu0 %v1114
      %1324 = vmatpush1.bf16.msra.mxu0 %v1113
      %1325 = vmatprep.subr.bf16.mxu0 %v1116
      %1326 = vmatpush1.bf16.msra.mxu0 %v1115
      %1327 = vmatprep.subr.bf16.mxu0 %v1118
      %1328 = vmatpush1.bf16.msra.mxu0 %v1117
      %1329 = vmatprep.subr.bf16.mxu0 %v1120
      %1330 = vmatpush1.bf16.msra.mxu0 %v1119
      %1331 = vmatprep.subr.bf16.mxu0 %v1122
      %1332 = vmatpush1.bf16.msra.mxu0 %v1121
      %1333 = vmatprep.subr.bf16.mxu0 %v1124
      %1334 = vmatpush1.bf16.msra.mxu0 %v1123
      %1335 = vmatprep.subr.bf16.mxu0 %v1126
      %1336 = vmatpush1.bf16.msra.mxu0 %v1125
      %1337 = vmatprep.subr.bf16.mxu0 %v1128
      %1338 = vmatpush1.bf16.msra.mxu0 %v1127
      %1339 = vmatprep.subr.bf16.mxu0 %v1130
      %1340 = vmatpush1.bf16.msra.mxu0 %v1129
      %1341 = vmatprep.subr.bf16.mxu0 %v1132
      %1342 = vmatpush1.bf16.msra.mxu0 %v1131
      %1343 = vmatprep.subr.bf16.mxu0 %v1134
      %1344 = vmatpush1.bf16.msra.mxu0 %v1133
      %1345 = vmatprep.subr.bf16.mxu0 %v1136
      %1346 = vmatpush1.bf16.msra.mxu0 %v1135
      %1347 = vmatprep.subr.bf16.mxu0 %v1138
      %1348 = vmatpush1.bf16.msra.mxu0 %v1137
      %1349 = vmatprep.subr.bf16.mxu0 %v1140
      %1350 = vmatpush1.bf16.msra.mxu0 %v1139
      %1351 = vmatprep.subr.bf16.mxu0 %v1142
      %1352 = vmatpush1.bf16.msra.mxu0 %v1141
      %1353 = vmatprep.subr.bf16.mxu0 %v1144
      %1354 = vmatpush1.bf16.msra.mxu0 %v1143
      %1355 = vmatprep.mubr.bf16.mxu0 %v652
      %1356 = vmatmul.mubr.bf16.gmra.mrb[0].mxu0 %v651
      %v1357 = vpop.f32.mrb[0].mxu0
      %v1358 = vadd.f32 %v1317, %v1357
      %v1359 = vpop.f32.mrb[0].mxu0
      %v1360 = vadd.f32 %v1319, %v1359
      %v1361 = vpop.f32.mrb[0].mxu0
      %v1362 = vpop.f32.mrb[0].mxu0
      %1363 = vdwg.mxu0
      %vm1364 = vcmp.gt.f32.partialorder %v1358, 0.0
      %vm1365 = vcmp.gt.f32.partialorder %v1360, 0.0
      %v1366 = vmul.f32 %v1358, 0.01
      %v1367 = vmul.f32 %v1360, 0.01
      %v1368 = vsel %vm1364, %v1358, %v1366
      %v1369 = vsel %vm1365, %v1360, %v1367
      %v1370 = vpack.c.bf16 %v1368, %v1368
      %v1371 = vpack.c.bf16 %v1369, %v1369
      %v1372 = vld [vmem:[#allocation9] sm:$0xf]
      %v1373 = vld [vmem:[#allocation9 + $0x4] sm:$0xf]
      %v1374 = vld [vmem:[#allocation9 + $0x8] sm:$0xf]
      %v1375 = vld [vmem:[#allocation9 + $0xc] sm:$0xf]
      %v1376 = vld [vmem:[#allocation9 + $0x10] sm:$0xf]
      %v1377 = vld [vmem:[#allocation9 + $0x14] sm:$0xf]
      %v1378 = vld [vmem:[#allocation9 + $0x18] sm:$0xf]
      %v1379 = vld [vmem:[#allocation9 + $0x1c] sm:$0xf]
      %v1380 = vld [vmem:[#allocation9 + $0x20] sm:$0xf]
      %v1381 = vld [vmem:[#allocation9 + $0x24] sm:$0xf]
      %v1382 = vld [vmem:[#allocation9 + $0x28] sm:$0xf]
      %v1383 = vld [vmem:[#allocation9 + $0x2c] sm:$0xf]
      %v1384 = vld [vmem:[#allocation9 + $0x30] sm:$0xf]
      %v1385 = vld [vmem:[#allocation9 + $0x34] sm:$0xf]
      %v1386 = vld [vmem:[#allocation9 + $0x38] sm:$0xf]
      %v1387 = vld [vmem:[#allocation9 + $0x3c] sm:$0xf]
      %v1388 = vld [vmem:[#allocation9 + $0x40] sm:$0xf]
      %v1389 = vld [vmem:[#allocation9 + $0x44] sm:$0xf]
      %v1390 = vld [vmem:[#allocation9 + $0x48] sm:$0xf]
      %v1391 = vld [vmem:[#allocation9 + $0x4c] sm:$0xf]
      %v1392 = vld [vmem:[#allocation9 + $0x50] sm:$0xf]
      %v1393 = vld [vmem:[#allocation9 + $0x54] sm:$0xf]
      %v1394 = vld [vmem:[#allocation9 + $0x58] sm:$0xf]
      %v1395 = vld [vmem:[#allocation9 + $0x5c] sm:$0xf]
      %v1396 = vld [vmem:[#allocation9 + $0x60] sm:$0xf]
      %v1397 = vld [vmem:[#allocation9 + $0x64] sm:$0xf]
      %v1398 = vld [vmem:[#allocation9 + $0x68] sm:$0xf]
      %v1399 = vld [vmem:[#allocation9 + $0x6c] sm:$0xf]
      %v1400 = vld [vmem:[#allocation9 + $0x70] sm:$0xf]
      %v1401 = vld [vmem:[#allocation9 + $0x74] sm:$0xf]
      %v1402 = vld [vmem:[#allocation9 + $0x78] sm:$0xf]
      %v1403 = vld [vmem:[#allocation9 + $0x7c] sm:$0xf]
      %v1404 = vld [vmem:[%s6] sm:$0x1]
      %v1406 = vlaneseq
      %v1407 = vshrl.u32 %v1406, 7
      %v1408 = vsub.s32 0, %v1407
      %v1409 = vrot.slane %v1404, %v1408
      %v1443 = vunpack.c.l.b16 %v1372
      %v1444 = vunpack.c.l.b16 %v1373
      %v1445 = vunpack.c.l.b16 %v1374
      %v1446 = vunpack.c.l.b16 %v1375
      %v1447 = vunpack.c.l.b16 %v1376
      %v1448 = vunpack.c.l.b16 %v1377
      %v1449 = vunpack.c.l.b16 %v1378
      %v1450 = vunpack.c.l.b16 %v1379
      %v1451 = vunpack.c.l.b16 %v1380
      %v1452 = vunpack.c.l.b16 %v1381
      %v1453 = vunpack.c.l.b16 %v1382
      %v1454 = vunpack.c.l.b16 %v1383
      %v1455 = vunpack.c.l.b16 %v1384
      %v1456 = vunpack.c.l.b16 %v1385
      %v1457 = vunpack.c.l.b16 %v1386
      %v1458 = vunpack.c.l.b16 %v1387
      %v1459 = vunpack.c.l.b16 %v1388
      %v1460 = vunpack.c.l.b16 %v1389
      %v1461 = vunpack.c.l.b16 %v1390
      %v1462 = vunpack.c.l.b16 %v1391
      %v1463 = vunpack.c.l.b16 %v1392
      %v1464 = vunpack.c.l.b16 %v1393
      %v1465 = vunpack.c.l.b16 %v1394
      %v1466 = vunpack.c.l.b16 %v1395
      %v1467 = vunpack.c.l.b16 %v1396
      %v1468 = vunpack.c.l.b16 %v1397
      %v1469 = vunpack.c.l.b16 %v1398
      %v1470 = vunpack.c.l.b16 %v1399
      %v1471 = vunpack.c.l.b16 %v1400
      %v1472 = vunpack.c.l.b16 %v1401
      %v1473 = vunpack.c.l.b16 %v1402
      %v1474 = vunpack.c.l.b16 %v1403
      %v1475 = vpack.c.b16 %v1444, %v1443
      %v1476 = vpack.c.b16 %v1446, %v1445
      %v1477 = vpack.c.b16 %v1448, %v1447
      %v1478 = vpack.c.b16 %v1450, %v1449
      %v1479 = vpack.c.b16 %v1452, %v1451
      %v1480 = vpack.c.b16 %v1454, %v1453
      %v1481 = vpack.c.b16 %v1456, %v1455
      %v1482 = vpack.c.b16 %v1458, %v1457
      %v1483 = vpack.c.b16 %v1460, %v1459
      %v1484 = vpack.c.b16 %v1462, %v1461
      %v1485 = vpack.c.b16 %v1464, %v1463
      %v1486 = vpack.c.b16 %v1466, %v1465
      %v1487 = vpack.c.b16 %v1468, %v1467
      %v1488 = vpack.c.b16 %v1470, %v1469
      %v1489 = vpack.c.b16 %v1472, %v1471
      %v1490 = vpack.c.b16 %v1474, %v1473
      %1507 = vmatprep.subr.bf16.mxu0 0
      %1508 = vmatpush1.bf16.msra.mxu0 %v1475
      %1509 = vmatprep.subr.bf16.mxu0 0
      %1510 = vmatpush1.bf16.msra.mxu0 %v1476
      %1511 = vmatprep.subr.bf16.mxu0 0
      %1512 = vmatpush1.bf16.msra.mxu0 %v1477
      %1513 = vmatprep.subr.bf16.mxu0 0
      %1514 = vmatpush1.bf16.msra.mxu0 %v1478
      %1515 = vmatprep.subr.bf16.mxu0 0
      %1516 = vmatpush1.bf16.msra.mxu0 %v1479
      %1517 = vmatprep.subr.bf16.mxu0 0
      %1518 = vmatpush1.bf16.msra.mxu0 %v1480
      %1519 = vmatprep.subr.bf16.mxu0 0
      %1520 = vmatpush1.bf16.msra.mxu0 %v1481
      %1521 = vmatprep.subr.bf16.mxu0 0
      %1522 = vmatpush1.bf16.msra.mxu0 %v1482
      %1523 = vmatprep.subr.bf16.mxu0 0
      %1524 = vmatpush1.bf16.msra.mxu0 %v1483
      %1525 = vmatprep.subr.bf16.mxu0 0
      %1526 = vmatpush1.bf16.msra.mxu0 %v1484
      %1527 = vmatprep.subr.bf16.mxu0 0
      %1528 = vmatpush1.bf16.msra.mxu0 %v1485
      %1529 = vmatprep.subr.bf16.mxu0 0
      %1530 = vmatpush1.bf16.msra.mxu0 %v1486
      %1531 = vmatprep.subr.bf16.mxu0 0
      %1532 = vmatpush1.bf16.msra.mxu0 %v1487
      %1533 = vmatprep.subr.bf16.mxu0 0
      %1534 = vmatpush1.bf16.msra.mxu0 %v1488
      %1535 = vmatprep.subr.bf16.mxu0 0
      %1536 = vmatpush1.bf16.msra.mxu0 %v1489
      %1537 = vmatprep.subr.bf16.mxu0 0
      %1538 = vmatpush1.bf16.msra.mxu0 %v1490
      %1539 = vmatprep.mubr.bf16.mxu0 %v1371
      %1540 = vmatmul.mubr.bf16.gmra.mrb[0].mxu0 %v1370
      %v1541 = vpop.f32.mrb[0].mxu0
      %v1542 = vadd.f32 %v1409, %v1541
      %v1543 = vpop.f32.mrb[0].mxu0
      %v1544 = vpop.f32.mrb[0].mxu0
      %v1545 = vpop.f32.mrb[0].mxu0
      %1546 = vdwg.mxu0
      %1547 = vst [vmem:[#allocation11] sm:$0x3] %v1542
    $region53: #{tpu_custom_call.1} parent=1 // pred_fallthru
      _
    // Predicated region
    $region54: #{tpu_custom_call.1} parent=1 // pred_check
      _
    $region55: #{tpu_custom_call.1} parent=1 // pred_check_branch
      %1549 = sbr.rel (0) target = $region57
    $region56: #{tpu_custom_call.1} parent=1 // pred_region
      %s1551 = ssub.s32 32, 32
      %1552 = vsyncadd [#allocation5], %s1551
      %s1554 = sshll.u32 [#allocation11], 4
      %s1555 = int_to_ptr.vmem [resolvable:$true] %s1554
      %1557 = dma.vmem_to_hbm [thread:$0]  %s1555, 32, %s7, [#allocation5]
    $region57: #{tpu_custom_call.1} parent=1 // pred_fallthru
      _
    // Predicated region
    $region58: #{tpu_custom_call.1} parent=1 // pred_check
      _
    $region59: #{tpu_custom_call.1} parent=1 // pred_check_branch
      %1559 = sbr.rel (0) target = $region61
    $region60: #{tpu_custom_call.1} parent=1 // pred_region
      %1560 = dma.done [#allocation5], 32
    $region61: #{tpu_custom_call.1} parent=1 // pred_fallthru
      _
    %1561 = vsyncpa [#allocation4], 1
    %1562 = vsyncpa [#allocation7], 1
    %1563 = vsyncpa [#allocation10], 1
    %1564 = vsyncpa [#allocation5], 1

</llo_original>
